<compile_context>
chip_gen: v7x
topology: tpu7x:2x2x1
jax: 0.10.0
libtpu: 0.0.40
codegen_flags: <defaults>
</compile_context>

<pallas_src>
import functools

import jax
import jax.numpy as jnp
from jax.experimental import pallas as pl
from jax.experimental.pallas import tpu as pltpu

DILATIONS = (1, 2, 3, 5)


def _srsp_kernel(coords_ref, x_ref, w_ref, b_ref, o_ref, *, H, W, Cg):
    """One batch element per grid step.

    coords_ref : (2, HW) f32     row 0 = y coord, row 1 = x coord per pixel
    x_ref      : (1, C, HW) f32  activations for this batch element
    w_ref      : (4, Cg, 9*Cg) f32  per-group im2col-flattened conv weights
    b_ref      : (C, 1) f32      conv biases (groups stacked along C)
    o_ref      : (1, C, HW) f32  output
    """
    HW = H * W
    row = coords_ref[0:1, :]   # (1, HW)
    col = coords_ref[1:2, :]   # (1, HW)

    for g, d in enumerate(DILATIONS):
        xg = x_ref[0, pl.ds(g * Cg, Cg), :]            # (Cg, HW), loaded once

        fd = float(d)
        # Border-validity masks, hoisted out of the tap loop.
        # Index 0 -> shift -d, 1 -> shift 0 (always valid), 2 -> shift +d.
        row_masks = (row >= fd, None, row <= float(H - 1) - fd)
        col_masks = (col >= fd, None, col <= float(W - 1) - fd)

        # Build the (9*Cg, HW) im2col matrix from lane rotations of xg.
        taps = []
        for ky in range(3):
            dy = (ky - 1) * d
            for kx in range(3):
                dx = (kx - 1) * d
                off = dy * W + dx
                # xs[c, p] = xg[c, (p + off) mod HW]; wrap killed by the mask.
                xs = pltpu.roll(xg, (-off) % HW, 1) if off != 0 else xg
                m = row_masks[ky]
                cm = col_masks[kx]
                if m is None:
                    m = cm
                elif cm is not None:
                    m = m & cm
                if m is not None:
                    xs = jnp.where(m, xs, 0.0)
                taps.append(xs)

        x_taps = jnp.concatenate(taps, axis=0)          # (9*Cg, HW)

        # Single deep matmul per group (contraction = 9*Cg) on the MXU.
        w_g = w_ref[g]                                  # (Cg, 9*Cg)
        acc = jnp.dot(w_g, x_taps,
                      preferred_element_type=jnp.float32)   # (Cg, HW)
        bias = b_ref[pl.ds(g * Cg, Cg), :]              # (Cg, 1)
        gate = jax.nn.sigmoid(acc + bias)               # EUP
        o_ref[0, pl.ds(g * Cg, Cg), :] = (xg * gate).astype(o_ref.dtype)


def srsp_forward(x_nchw, weights, biases):
    """x_nchw: (B, C, H, W) f32; weights[g]: (Cg, Cg, 3, 3); biases[g]: (Cg,)."""
    B, C, H, W = x_nchw.shape
    assert C % 4 == 0, "Input channels must be divisible by 4"
    Cg = C // 4
    HW = H * W

    # Free reshape only — no transposes, no extra HBM passes.
    x_flat = x_nchw.reshape(B, C, HW).astype(jnp.float32)

    # Pre-flatten weights once (tiny): (Cout, Cin, 3, 3) -> (Cout, 9*Cin),
    # column order tap-major (t = ky*3 + kx) then Cin — matches x_taps rows.
    def flatten_w(w):
        wf = jnp.transpose(w, (2, 3, 0, 1)).reshape(9, Cg, Cg)   # (t, Cout, Cin)
        return jnp.transpose(wf, (1, 0, 2)).reshape(Cg, 9 * Cg)

    w_stacked = jnp.stack([flatten_w(w) for w in weights],
                          axis=0).astype(jnp.float32)             # (4, Cg, 9*Cg)
    b_stacked = jnp.concatenate([b.reshape(Cg, 1) for b in biases],
                                axis=0).astype(jnp.float32)       # (C, 1)

    # Pixel coordinates for the border masks.
    pix = jnp.arange(HW, dtype=jnp.int32)
    coords = jnp.stack([(pix // W).astype(jnp.float32),
                        (pix % W).astype(jnp.float32)], axis=0)   # (2, HW)

    kernel = functools.partial(_srsp_kernel, H=H, W=W, Cg=Cg)

    # VMEM budget: double-buffered in/out blocks, im2col temporaries,
    # constants, headroom.  Capped at 48 MiB (fits v7x's 64 MiB physical VMEM).
    block_bytes = C * HW * 4
    im2col_bytes = 9 * Cg * HW * 4
    const_bytes = (w_stacked.size + b_stacked.size + coords.size) * 4
    vmem_limit = int(min(48 * 1024 * 1024,
                         max(32 * 1024 * 1024,
                             4 * block_bytes + 2 * im2col_bytes
                             + 2 * const_bytes + 4 * 1024 * 1024)))

    out = pl.pallas_call(
        kernel,
        out_shape=jax.ShapeDtypeStruct((B, C, HW), jnp.float32),
        grid=(B,),
        in_specs=[
            pl.BlockSpec((2, HW), lambda b: (0, 0)),                  # coords
            pl.BlockSpec((1, C, HW), lambda b: (b, 0, 0)),            # x
            pl.BlockSpec((4, Cg, 9 * Cg), lambda b: (0, 0, 0)),       # weights
            pl.BlockSpec((C, 1), lambda b: (0, 0)),                   # biases
        ],
        out_specs=pl.BlockSpec((1, C, HW), lambda b: (b, 0, 0)),
        compiler_params=pltpu.CompilerParams(
            dimension_semantics=("parallel",),
            vmem_limit_bytes=vmem_limit),
    )(coords, x_flat, w_stacked, b_stacked)

    # Free reshape back to NCHW.
    return out.reshape(B, C, H, W)


def init_params(key, C):
    """Deterministic parameters mirroring the module's conv shapes."""
    Cg = C // 4
    keys = jax.random.split(key, 8)
    weights, biases = [], []
    scale = 1.0 / (3.0 * float(Cg) ** 0.5)
    for i in range(4):
        w = jax.random.normal(keys[2 * i], (Cg, Cg, 3, 3), jnp.float32) * scale
        b = jax.random.normal(keys[2 * i + 1], (Cg,), jnp.float32) * 0.1
        weights.append(w)
        biases.append(b)
    return weights, biases


def reference_forward(x, weights, biases):
    """Pure-JAX reference matching the PyTorch forward, for validation."""
    B, C, H, W = x.shape
    Cg = C // 4
    outs = []
    for g, d in enumerate(DILATIONS):
        xg = x[:, g * Cg:(g + 1) * Cg]
        y = jax.lax.conv_general_dilated(
            xg, weights[g], window_strides=(1, 1),
            padding=[(d, d), (d, d)], rhs_dilation=(d, d),
            dimension_numbers=('NCHW', 'OIHW', 'NCHW'),
            precision=jax.lax.Precision.HIGHEST)
        y = y + biases[g].reshape(1, Cg, 1, 1)
        outs.append(xg * jax.nn.sigmoid(y))
    return jnp.concatenate(outs, axis=1)


if __name__ == "__main__":
    # Small shapes consistent with the module (channels divisible by 4).
    B, C, H, W = 2, 32, 16, 16
    key = jax.random.PRNGKey(0)
    kx, kp = jax.random.split(key)
    x = jax.random.normal(kx, (B, C, H, W), jnp.float32)
    weights, biases = init_params(kp, C)

    out = jax.block_until_ready(srsp_forward(x, weights, biases))
    ref = jax.block_until_ready(reference_forward(x, weights, biases))

    assert out.shape == (B, C, H, W)
    max_err = float(jnp.max(jnp.abs(out - ref)))
    assert jnp.allclose(out, ref, atol=2e-2, rtol=2e-2), \
        f"mismatch vs reference: max abs err {max_err}"
    print("KERNEL_OK")
</pallas_src>

<mosaic_0001>
module attributes {stable_mosaic.version = 11 : i64} {
  func.func @_srsp_kernel(%arg0: i32, %arg1: memref<2x256xf32, #tpu.memory_space<vmem>>, %arg2: memref<1x32x256xf32, #tpu.memory_space<vmem>>, %arg3: memref<4x8x72xf32, #tpu.memory_space<vmem>>, %arg4: memref<32x1xf32, #tpu.memory_space<vmem>>, %arg5: memref<1x32x256xf32, #tpu.memory_space<vmem>>) attributes {dimension_semantics = [#tpu.dimension_semantics<parallel>], iteration_bounds = array<i64: 2>, scalar_prefetch = 0 : i64, scratch_operands = 0 : i64, tpu.core_type = #tpu.core_type<tc>, window_params = [{pipeline_mode = #tpu.pipeline_mode<synchronous>, transform_indices = @transform_0, window_bounds = array<i64: 2, 256>}, {transform_indices = @transform_1, window_bounds = array<i64: 1, 32, 256>}, {pipeline_mode = #tpu.pipeline_mode<synchronous>, transform_indices = @transform_2, window_bounds = array<i64: 4, 8, 72>}, {pipeline_mode = #tpu.pipeline_mode<synchronous>, transform_indices = @transform_3, window_bounds = array<i64: 32, 1>}, {transform_indices = @transform_4, window_bounds = array<i64: 1, 32, 256>}]} {
    %c0 = arith.constant 0 : index
    %c0_0 = arith.constant 0 : index
    %0 = vector.load %arg1[%c0, %c0_0] : memref<2x256xf32, #tpu.memory_space<vmem>>, vector<1x256xf32>
    %c1 = arith.constant 1 : index
    %c0_1 = arith.constant 0 : index
    %1 = vector.load %arg1[%c1, %c0_1] : memref<2x256xf32, #tpu.memory_space<vmem>>, vector<1x256xf32>
    %c0_2 = arith.constant 0 : index
    %c0_3 = arith.constant 0 : index
    %c0_4 = arith.constant 0 : index
    %2 = vector.load %arg2[%c0_2, %c0_3, %c0_4] : memref<1x32x256xf32, #tpu.memory_space<vmem>>, vector<1x8x256xf32>
    %3 = vector.shape_cast %2 : vector<1x8x256xf32> to vector<8x256xf32>
    %cst = arith.constant 1.000000e+00 : f32
    %4 = vector.broadcast %cst : f32 to vector<1x256xf32>
    %5 = arith.cmpf oge, %0, %4 : vector<1x256xf32>
    %cst_5 = arith.constant 1.400000e+01 : f32
    %6 = vector.broadcast %cst_5 : f32 to vector<1x256xf32>
    %7 = arith.cmpf ole, %0, %6 : vector<1x256xf32>
    %cst_6 = arith.constant 1.000000e+00 : f32
    %8 = vector.broadcast %cst_6 : f32 to vector<1x256xf32>
    %9 = arith.cmpf oge, %1, %8 : vector<1x256xf32>
    %cst_7 = arith.constant 1.400000e+01 : f32
    %10 = vector.broadcast %cst_7 : f32 to vector<1x256xf32>
    %11 = arith.cmpf ole, %1, %10 : vector<1x256xf32>
    %c17_i32 = arith.constant 17 : i32
    %12 = tpu.dynamic_rotate %3 by %c17_i32 dim 1 : vector<8x256xf32>, i32 -> vector<8x256xf32>
    %13 = arith.andi %5, %9 : vector<1x256xi1>
    %cst_8 = arith.constant 0.000000e+00 : f32
    %14 = vector.shape_cast %13 : vector<1x256xi1> to vector<1x256xi1>
    %15 = vector.broadcast %14 : vector<1x256xi1> to vector<8x256xi1>
    %16 = vector.broadcast %cst_8 : f32 to vector<8x256xf32>
    %17 = arith.select %15, %12, %16 : vector<8x256xi1>, vector<8x256xf32>
    %c16_i32 = arith.constant 16 : i32
    %18 = tpu.dynamic_rotate %3 by %c16_i32 dim 1 : vector<8x256xf32>, i32 -> vector<8x256xf32>
    %cst_9 = arith.constant 0.000000e+00 : f32
    %19 = vector.shape_cast %5 : vector<1x256xi1> to vector<1x256xi1>
    %20 = vector.broadcast %19 : vector<1x256xi1> to vector<8x256xi1>
    %21 = vector.broadcast %cst_9 : f32 to vector<8x256xf32>
    %22 = arith.select %20, %18, %21 : vector<8x256xi1>, vector<8x256xf32>
    %c15_i32 = arith.constant 15 : i32
    %23 = tpu.dynamic_rotate %3 by %c15_i32 dim 1 : vector<8x256xf32>, i32 -> vector<8x256xf32>
    %24 = arith.andi %5, %11 : vector<1x256xi1>
    %cst_10 = arith.constant 0.000000e+00 : f32
    %25 = vector.shape_cast %24 : vector<1x256xi1> to vector<1x256xi1>
    %26 = vector.broadcast %25 : vector<1x256xi1> to vector<8x256xi1>
    %27 = vector.broadcast %cst_10 : f32 to vector<8x256xf32>
    %28 = arith.select %26, %23, %27 : vector<8x256xi1>, vector<8x256xf32>
    %c1_i32 = arith.constant 1 : i32
    %29 = tpu.dynamic_rotate %3 by %c1_i32 dim 1 : vector<8x256xf32>, i32 -> vector<8x256xf32>
    %cst_11 = arith.constant 0.000000e+00 : f32
    %30 = vector.shape_cast %9 : vector<1x256xi1> to vector<1x256xi1>
    %31 = vector.broadcast %30 : vector<1x256xi1> to vector<8x256xi1>
    %32 = vector.broadcast %cst_11 : f32 to vector<8x256xf32>
    %33 = arith.select %31, %29, %32 : vector<8x256xi1>, vector<8x256xf32>
    %c255_i32 = arith.constant 255 : i32
    %34 = tpu.dynamic_rotate %3 by %c255_i32 dim 1 : vector<8x256xf32>, i32 -> vector<8x256xf32>
    %cst_12 = arith.constant 0.000000e+00 : f32
    %35 = vector.shape_cast %11 : vector<1x256xi1> to vector<1x256xi1>
    %36 = vector.broadcast %35 : vector<1x256xi1> to vector<8x256xi1>
    %37 = vector.broadcast %cst_12 : f32 to vector<8x256xf32>
    %38 = arith.select %36, %34, %37 : vector<8x256xi1>, vector<8x256xf32>
    %c241_i32 = arith.constant 241 : i32
    %39 = tpu.dynamic_rotate %3 by %c241_i32 dim 1 : vector<8x256xf32>, i32 -> vector<8x256xf32>
    %40 = arith.andi %7, %9 : vector<1x256xi1>
    %cst_13 = arith.constant 0.000000e+00 : f32
    %41 = vector.shape_cast %40 : vector<1x256xi1> to vector<1x256xi1>
    %42 = vector.broadcast %41 : vector<1x256xi1> to vector<8x256xi1>
    %43 = vector.broadcast %cst_13 : f32 to vector<8x256xf32>
    %44 = arith.select %42, %39, %43 : vector<8x256xi1>, vector<8x256xf32>
    %c240_i32 = arith.constant 240 : i32
    %45 = tpu.dynamic_rotate %3 by %c240_i32 dim 1 : vector<8x256xf32>, i32 -> vector<8x256xf32>
    %cst_14 = arith.constant 0.000000e+00 : f32
    %46 = vector.shape_cast %7 : vector<1x256xi1> to vector<1x256xi1>
    %47 = vector.broadcast %46 : vector<1x256xi1> to vector<8x256xi1>
    %48 = vector.broadcast %cst_14 : f32 to vector<8x256xf32>
    %49 = arith.select %47, %45, %48 : vector<8x256xi1>, vector<8x256xf32>
    %c239_i32 = arith.constant 239 : i32
    %50 = tpu.dynamic_rotate %3 by %c239_i32 dim 1 : vector<8x256xf32>, i32 -> vector<8x256xf32>
    %51 = arith.andi %7, %11 : vector<1x256xi1>
    %cst_15 = arith.constant 0.000000e+00 : f32
    %52 = vector.shape_cast %51 : vector<1x256xi1> to vector<1x256xi1>
    %53 = vector.broadcast %52 : vector<1x256xi1> to vector<8x256xi1>
    %54 = vector.broadcast %cst_15 : f32 to vector<8x256xf32>
    %55 = arith.select %53, %50, %54 : vector<8x256xi1>, vector<8x256xf32>
    %56 = tpu.concatenate %17, %22, %28, %33, %3, %38, %44, %49, %55 in 0 : vector<8x256xf32>, vector<8x256xf32>, vector<8x256xf32>, vector<8x256xf32>, vector<8x256xf32>, vector<8x256xf32>, vector<8x256xf32>, vector<8x256xf32>, vector<8x256xf32> -> vector<72x256xf32>
    %c0_16 = arith.constant 0 : index
    %c0_17 = arith.constant 0 : index
    %c0_18 = arith.constant 0 : index
    %57 = vector.load %arg3[%c0_16, %c0_17, %c0_18] : memref<4x8x72xf32, #tpu.memory_space<vmem>>, vector<1x8x72xf32>
    %58 = vector.shape_cast %57 : vector<1x8x72xf32> to vector<8x72xf32>
    %cst_19 = arith.constant dense<0.000000e+00> : vector<8x256xf32>
    %59 = tpu.matmul %58, %56, %cst_19 {dimension_numbers = #tpu.dot_dimension_numbers<[1], [0], [0], [1], [0, 0, 1, 1], [], []>} : vector<8x72xf32>, vector<72x256xf32>, vector<8x256xf32> -> vector<8x256xf32>
    %c0_20 = arith.constant 0 : index
    %c0_21 = arith.constant 0 : index
    %60 = vector.load %arg4[%c0_20, %c0_21] : memref<32x1xf32, #tpu.memory_space<vmem>>, vector<8x1xf32>
    %61 = vector.broadcast %60 : vector<8x1xf32> to vector<8x256xf32>
    %62 = arith.addf %59, %61 : vector<8x256xf32>
    %63 = arith.negf %62 : vector<8x256xf32>
    %64 = math.exp %63 : vector<8x256xf32>
    %cst_22 = arith.constant 1.000000e+00 : f32
    %65 = vector.broadcast %cst_22 : f32 to vector<8x256xf32>
    %66 = arith.addf %65, %64 : vector<8x256xf32>
    %67 = arith.divf %65, %66 : vector<8x256xf32>
    %68 = arith.mulf %3, %67 : vector<8x256xf32>
    %c0_23 = arith.constant 0 : index
    %c0_24 = arith.constant 0 : index
    %c0_25 = arith.constant 0 : index
    %69 = vector.load %arg5[%c0_23, %c0_24, %c0_25] : memref<1x32x256xf32, #tpu.memory_space<vmem>>, vector<1x8x256xf32>
    %70 = vector.shape_cast %69 : vector<1x8x256xf32> to vector<8x256xf32>
    %71 = vector.shape_cast %68 : vector<8x256xf32> to vector<1x8x256xf32>
    tpu.vector_store %arg5[%c0_23, %c0_24, %c0_25], %71 {strides = array<i32>} : memref<1x32x256xf32, #tpu.memory_space<vmem>>, vector<1x8x256xf32>,
    %c0_26 = arith.constant 0 : index
    %c8 = arith.constant 8 : index
    %c0_27 = arith.constant 0 : index
    %72 = vector.load %arg2[%c0_26, %c8, %c0_27] : memref<1x32x256xf32, #tpu.memory_space<vmem>>, vector<1x8x256xf32>
    %73 = vector.shape_cast %72 : vector<1x8x256xf32> to vector<8x256xf32>
    %cst_28 = arith.constant 2.000000e+00 : f32
    %74 = vector.broadcast %cst_28 : f32 to vector<1x256xf32>
    %75 = arith.cmpf oge, %0, %74 : vector<1x256xf32>
    %cst_29 = arith.constant 1.300000e+01 : f32
    %76 = vector.broadcast %cst_29 : f32 to vector<1x256xf32>
    %77 = arith.cmpf ole, %0, %76 : vector<1x256xf32>
    %cst_30 = arith.constant 2.000000e+00 : f32
    %78 = vector.broadcast %cst_30 : f32 to vector<1x256xf32>
    %79 = arith.cmpf oge, %1, %78 : vector<1x256xf32>
    %cst_31 = arith.constant 1.300000e+01 : f32
    %80 = vector.broadcast %cst_31 : f32 to vector<1x256xf32>
    %81 = arith.cmpf ole, %1, %80 : vector<1x256xf32>
    %c34_i32 = arith.constant 34 : i32
    %82 = tpu.dynamic_rotate %73 by %c34_i32 dim 1 : vector<8x256xf32>, i32 -> vector<8x256xf32>
    %83 = arith.andi %75, %79 : vector<1x256xi1>
    %cst_32 = arith.constant 0.000000e+00 : f32
    %84 = vector.shape_cast %83 : vector<1x256xi1> to vector<1x256xi1>
    %85 = vector.broadcast %84 : vector<1x256xi1> to vector<8x256xi1>
    %86 = vector.broadcast %cst_32 : f32 to vector<8x256xf32>
    %87 = arith.select %85, %82, %86 : vector<8x256xi1>, vector<8x256xf32>
    %c32_i32 = arith.constant 32 : i32
    %88 = tpu.dynamic_rotate %73 by %c32_i32 dim 1 : vector<8x256xf32>, i32 -> vector<8x256xf32>
    %cst_33 = arith.constant 0.000000e+00 : f32
    %89 = vector.shape_cast %75 : vector<1x256xi1> to vector<1x256xi1>
    %90 = vector.broadcast %89 : vector<1x256xi1> to vector<8x256xi1>
    %91 = vector.broadcast %cst_33 : f32 to vector<8x256xf32>
    %92 = arith.select %90, %88, %91 : vector<8x256xi1>, vector<8x256xf32>
    %c30_i32 = arith.constant 30 : i32
    %93 = tpu.dynamic_rotate %73 by %c30_i32 dim 1 : vector<8x256xf32>, i32 -> vector<8x256xf32>
    %94 = arith.andi %75, %81 : vector<1x256xi1>
    %cst_34 = arith.constant 0.000000e+00 : f32
    %95 = vector.shape_cast %94 : vector<1x256xi1> to vector<1x256xi1>
    %96 = vector.broadcast %95 : vector<1x256xi1> to vector<8x256xi1>
    %97 = vector.broadcast %cst_34 : f32 to vector<8x256xf32>
    %98 = arith.select %96, %93, %97 : vector<8x256xi1>, vector<8x256xf32>
    %c2_i32 = arith.constant 2 : i32
    %99 = tpu.dynamic_rotate %73 by %c2_i32 dim 1 : vector<8x256xf32>, i32 -> vector<8x256xf32>
    %cst_35 = arith.constant 0.000000e+00 : f32
    %100 = vector.shape_cast %79 : vector<1x256xi1> to vector<1x256xi1>
    %101 = vector.broadcast %100 : vector<1x256xi1> to vector<8x256xi1>
    %102 = vector.broadcast %cst_35 : f32 to vector<8x256xf32>
    %103 = arith.select %101, %99, %102 : vector<8x256xi1>, vector<8x256xf32>
    %c254_i32 = arith.constant 254 : i32
    %104 = tpu.dynamic_rotate %73 by %c254_i32 dim 1 : vector<8x256xf32>, i32 -> vector<8x256xf32>
    %cst_36 = arith.constant 0.000000e+00 : f32
    %105 = vector.shape_cast %81 : vector<1x256xi1> to vector<1x256xi1>
    %106 = vector.broadcast %105 : vector<1x256xi1> to vector<8x256xi1>
    %107 = vector.broadcast %cst_36 : f32 to vector<8x256xf32>
    %108 = arith.select %106, %104, %107 : vector<8x256xi1>, vector<8x256xf32>
    %c226_i32 = arith.constant 226 : i32
    %109 = tpu.dynamic_rotate %73 by %c226_i32 dim 1 : vector<8x256xf32>, i32 -> vector<8x256xf32>
    %110 = arith.andi %77, %79 : vector<1x256xi1>
    %cst_37 = arith.constant 0.000000e+00 : f32
    %111 = vector.shape_cast %110 : vector<1x256xi1> to vector<1x256xi1>
    %112 = vector.broadcast %111 : vector<1x256xi1> to vector<8x256xi1>
    %113 = vector.broadcast %cst_37 : f32 to vector<8x256xf32>
    %114 = arith.select %112, %109, %113 : vector<8x256xi1>, vector<8x256xf32>
    %c224_i32 = arith.constant 224 : i32
    %115 = tpu.dynamic_rotate %73 by %c224_i32 dim 1 : vector<8x256xf32>, i32 -> vector<8x256xf32>
    %cst_38 = arith.constant 0.000000e+00 : f32
    %116 = vector.shape_cast %77 : vector<1x256xi1> to vector<1x256xi1>
    %117 = vector.broadcast %116 : vector<1x256xi1> to vector<8x256xi1>
    %118 = vector.broadcast %cst_38 : f32 to vector<8x256xf32>
    %119 = arith.select %117, %115, %118 : vector<8x256xi1>, vector<8x256xf32>
    %c222_i32 = arith.constant 222 : i32
    %120 = tpu.dynamic_rotate %73 by %c222_i32 dim 1 : vector<8x256xf32>, i32 -> vector<8x256xf32>
    %121 = arith.andi %77, %81 : vector<1x256xi1>
    %cst_39 = arith.constant 0.000000e+00 : f32
    %122 = vector.shape_cast %121 : vector<1x256xi1> to vector<1x256xi1>
    %123 = vector.broadcast %122 : vector<1x256xi1> to vector<8x256xi1>
    %124 = vector.broadcast %cst_39 : f32 to vector<8x256xf32>
    %125 = arith.select %123, %120, %124 : vector<8x256xi1>, vector<8x256xf32>
    %126 = tpu.concatenate %87, %92, %98, %103, %73, %108, %114, %119, %125 in 0 : vector<8x256xf32>, vector<8x256xf32>, vector<8x256xf32>, vector<8x256xf32>, vector<8x256xf32>, vector<8x256xf32>, vector<8x256xf32>, vector<8x256xf32>, vector<8x256xf32> -> vector<72x256xf32>
    %c1_40 = arith.constant 1 : index
    %c0_41 = arith.constant 0 : index
    %c0_42 = arith.constant 0 : index
    %127 = vector.load %arg3[%c1_40, %c0_41, %c0_42] : memref<4x8x72xf32, #tpu.memory_space<vmem>>, vector<1x8x72xf32>
    %128 = vector.shape_cast %127 : vector<1x8x72xf32> to vector<8x72xf32>
    %cst_43 = arith.constant dense<0.000000e+00> : vector<8x256xf32>
    %129 = tpu.matmul %128, %126, %cst_43 {dimension_numbers = #tpu.dot_dimension_numbers<[1], [0], [0], [1], [0, 0, 1, 1], [], []>} : vector<8x72xf32>, vector<72x256xf32>, vector<8x256xf32> -> vector<8x256xf32>
    %c8_44 = arith.constant 8 : index
    %c0_45 = arith.constant 0 : index
    %130 = vector.load %arg4[%c8_44, %c0_45] : memref<32x1xf32, #tpu.memory_space<vmem>>, vector<8x1xf32>
    %131 = vector.broadcast %130 : vector<8x1xf32> to vector<8x256xf32>
    %132 = arith.addf %129, %131 : vector<8x256xf32>
    %133 = arith.negf %132 : vector<8x256xf32>
    %134 = math.exp %133 : vector<8x256xf32>
    %cst_46 = arith.constant 1.000000e+00 : f32
    %135 = vector.broadcast %cst_46 : f32 to vector<8x256xf32>
    %136 = arith.addf %135, %134 : vector<8x256xf32>
    %137 = arith.divf %135, %136 : vector<8x256xf32>
    %138 = arith.mulf %73, %137 : vector<8x256xf32>
    %c0_47 = arith.constant 0 : index
    %c8_48 = arith.constant 8 : index
    %c0_49 = arith.constant 0 : index
    %139 = vector.load %arg5[%c0_47, %c8_48, %c0_49] : memref<1x32x256xf32, #tpu.memory_space<vmem>>, vector<1x8x256xf32>
    %140 = vector.shape_cast %139 : vector<1x8x256xf32> to vector<8x256xf32>
    %141 = vector.shape_cast %138 : vector<8x256xf32> to vector<1x8x256xf32>
    tpu.vector_store %arg5[%c0_47, %c8_48, %c0_49], %141 {strides = array<i32>} : memref<1x32x256xf32, #tpu.memory_space<vmem>>, vector<1x8x256xf32>,
    %c0_50 = arith.constant 0 : index
    %c16 = arith.constant 16 : index
    %c0_51 = arith.constant 0 : index
    %142 = vector.load %arg2[%c0_50, %c16, %c0_51] : memref<1x32x256xf32, #tpu.memory_space<vmem>>, vector<1x8x256xf32>
    %143 = vector.shape_cast %142 : vector<1x8x256xf32> to vector<8x256xf32>
    %cst_52 = arith.constant 3.000000e+00 : f32
    %144 = vector.broadcast %cst_52 : f32 to vector<1x256xf32>
    %145 = arith.cmpf oge, %0, %144 : vector<1x256xf32>
    %cst_53 = arith.constant 1.200000e+01 : f32
    %146 = vector.broadcast %cst_53 : f32 to vector<1x256xf32>
    %147 = arith.cmpf ole, %0, %146 : vector<1x256xf32>
    %cst_54 = arith.constant 3.000000e+00 : f32
    %148 = vector.broadcast %cst_54 : f32 to vector<1x256xf32>
    %149 = arith.cmpf oge, %1, %148 : vector<1x256xf32>
    %cst_55 = arith.constant 1.200000e+01 : f32
    %150 = vector.broadcast %cst_55 : f32 to vector<1x256xf32>
    %151 = arith.cmpf ole, %1, %150 : vector<1x256xf32>
    %c51_i32 = arith.constant 51 : i32
    %152 = tpu.dynamic_rotate %143 by %c51_i32 dim 1 : vector<8x256xf32>, i32 -> vector<8x256xf32>
    %153 = arith.andi %145, %149 : vector<1x256xi1>
    %cst_56 = arith.constant 0.000000e+00 : f32
    %154 = vector.shape_cast %153 : vector<1x256xi1> to vector<1x256xi1>
    %155 = vector.broadcast %154 : vector<1x256xi1> to vector<8x256xi1>
    %156 = vector.broadcast %cst_56 : f32 to vector<8x256xf32>
    %157 = arith.select %155, %152, %156 : vector<8x256xi1>, vector<8x256xf32>
    %c48_i32 = arith.constant 48 : i32
    %158 = tpu.dynamic_rotate %143 by %c48_i32 dim 1 : vector<8x256xf32>, i32 -> vector<8x256xf32>
    %cst_57 = arith.constant 0.000000e+00 : f32
    %159 = vector.shape_cast %145 : vector<1x256xi1> to vector<1x256xi1>
    %160 = vector.broadcast %159 : vector<1x256xi1> to vector<8x256xi1>
    %161 = vector.broadcast %cst_57 : f32 to vector<8x256xf32>
    %162 = arith.select %160, %158, %161 : vector<8x256xi1>, vector<8x256xf32>
    %c45_i32 = arith.constant 45 : i32
    %163 = tpu.dynamic_rotate %143 by %c45_i32 dim 1 : vector<8x256xf32>, i32 -> vector<8x256xf32>
    %164 = arith.andi %145, %151 : vector<1x256xi1>
    %cst_58 = arith.constant 0.000000e+00 : f32
    %165 = vector.shape_cast %164 : vector<1x256xi1> to vector<1x256xi1>
    %166 = vector.broadcast %165 : vector<1x256xi1> to vector<8x256xi1>
    %167 = vector.broadcast %cst_58 : f32 to vector<8x256xf32>
    %168 = arith.select %166, %163, %167 : vector<8x256xi1>, vector<8x256xf32>
    %c3_i32 = arith.constant 3 : i32
    %169 = tpu.dynamic_rotate %143 by %c3_i32 dim 1 : vector<8x256xf32>, i32 -> vector<8x256xf32>
    %cst_59 = arith.constant 0.000000e+00 : f32
    %170 = vector.shape_cast %149 : vector<1x256xi1> to vector<1x256xi1>
    %171 = vector.broadcast %170 : vector<1x256xi1> to vector<8x256xi1>
    %172 = vector.broadcast %cst_59 : f32 to vector<8x256xf32>
    %173 = arith.select %171, %169, %172 : vector<8x256xi1>, vector<8x256xf32>
    %c253_i32 = arith.constant 253 : i32
    %174 = tpu.dynamic_rotate %143 by %c253_i32 dim 1 : vector<8x256xf32>, i32 -> vector<8x256xf32>
    %cst_60 = arith.constant 0.000000e+00 : f32
    %175 = vector.shape_cast %151 : vector<1x256xi1> to vector<1x256xi1>
    %176 = vector.broadcast %175 : vector<1x256xi1> to vector<8x256xi1>
    %177 = vector.broadcast %cst_60 : f32 to vector<8x256xf32>
    %178 = arith.select %176, %174, %177 : vector<8x256xi1>, vector<8x256xf32>
    %c211_i32 = arith.constant 211 : i32
    %179 = tpu.dynamic_rotate %143 by %c211_i32 dim 1 : vector<8x256xf32>, i32 -> vector<8x256xf32>
    %180 = arith.andi %147, %149 : vector<1x256xi1>
    %cst_61 = arith.constant 0.000000e+00 : f32
    %181 = vector.shape_cast %180 : vector<1x256xi1> to vector<1x256xi1>
    %182 = vector.broadcast %181 : vector<1x256xi1> to vector<8x256xi1>
    %183 = vector.broadcast %cst_61 : f32 to vector<8x256xf32>
    %184 = arith.select %182, %179, %183 : vector<8x256xi1>, vector<8x256xf32>
    %c208_i32 = arith.constant 208 : i32
    %185 = tpu.dynamic_rotate %143 by %c208_i32 dim 1 : vector<8x256xf32>, i32 -> vector<8x256xf32>
    %cst_62 = arith.constant 0.000000e+00 : f32
    %186 = vector.shape_cast %147 : vector<1x256xi1> to vector<1x256xi1>
    %187 = vector.broadcast %186 : vector<1x256xi1> to vector<8x256xi1>
    %188 = vector.broadcast %cst_62 : f32 to vector<8x256xf32>
    %189 = arith.select %187, %185, %188 : vector<8x256xi1>, vector<8x256xf32>
    %c205_i32 = arith.constant 205 : i32
    %190 = tpu.dynamic_rotate %143 by %c205_i32 dim 1 : vector<8x256xf32>, i32 -> vector<8x256xf32>
    %191 = arith.andi %147, %151 : vector<1x256xi1>
    %cst_63 = arith.constant 0.000000e+00 : f32
    %192 = vector.shape_cast %191 : vector<1x256xi1> to vector<1x256xi1>
    %193 = vector.broadcast %192 : vector<1x256xi1> to vector<8x256xi1>
    %194 = vector.broadcast %cst_63 : f32 to vector<8x256xf32>
    %195 = arith.select %193, %190, %194 : vector<8x256xi1>, vector<8x256xf32>
    %196 = tpu.concatenate %157, %162, %168, %173, %143, %178, %184, %189, %195 in 0 : vector<8x256xf32>, vector<8x256xf32>, vector<8x256xf32>, vector<8x256xf32>, vector<8x256xf32>, vector<8x256xf32>, vector<8x256xf32>, vector<8x256xf32>, vector<8x256xf32> -> vector<72x256xf32>
    %c2 = arith.constant 2 : index
    %c0_64 = arith.constant 0 : index
    %c0_65 = arith.constant 0 : index
    %197 = vector.load %arg3[%c2, %c0_64, %c0_65] : memref<4x8x72xf32, #tpu.memory_space<vmem>>, vector<1x8x72xf32>
    %198 = vector.shape_cast %197 : vector<1x8x72xf32> to vector<8x72xf32>
    %cst_66 = arith.constant dense<0.000000e+00> : vector<8x256xf32>
    %199 = tpu.matmul %198, %196, %cst_66 {dimension_numbers = #tpu.dot_dimension_numbers<[1], [0], [0], [1], [0, 0, 1, 1], [], []>} : vector<8x72xf32>, vector<72x256xf32>, vector<8x256xf32> -> vector<8x256xf32>
    %c16_67 = arith.constant 16 : index
    %c0_68 = arith.constant 0 : index
    %200 = vector.load %arg4[%c16_67, %c0_68] : memref<32x1xf32, #tpu.memory_space<vmem>>, vector<8x1xf32>
    %201 = vector.broadcast %200 : vector<8x1xf32> to vector<8x256xf32>
    %202 = arith.addf %199, %201 : vector<8x256xf32>
    %203 = arith.negf %202 : vector<8x256xf32>
    %204 = math.exp %203 : vector<8x256xf32>
    %cst_69 = arith.constant 1.000000e+00 : f32
    %205 = vector.broadcast %cst_69 : f32 to vector<8x256xf32>
    %206 = arith.addf %205, %204 : vector<8x256xf32>
    %207 = arith.divf %205, %206 : vector<8x256xf32>
    %208 = arith.mulf %143, %207 : vector<8x256xf32>
    %c0_70 = arith.constant 0 : index
    %c16_71 = arith.constant 16 : index
    %c0_72 = arith.constant 0 : index
    %209 = vector.load %arg5[%c0_70, %c16_71, %c0_72] : memref<1x32x256xf32, #tpu.memory_space<vmem>>, vector<1x8x256xf32>
    %210 = vector.shape_cast %209 : vector<1x8x256xf32> to vector<8x256xf32>
    %211 = vector.shape_cast %208 : vector<8x256xf32> to vector<1x8x256xf32>
    tpu.vector_store %arg5[%c0_70, %c16_71, %c0_72], %211 {strides = array<i32>} : memref<1x32x256xf32, #tpu.memory_space<vmem>>, vector<1x8x256xf32>,
    %c0_73 = arith.constant 0 : index
    %c24 = arith.constant 24 : index
    %c0_74 = arith.constant 0 : index
    %212 = vector.load %arg2[%c0_73, %c24, %c0_74] : memref<1x32x256xf32, #tpu.memory_space<vmem>>, vector<1x8x256xf32>
    %213 = vector.shape_cast %212 : vector<1x8x256xf32> to vector<8x256xf32>
    %cst_75 = arith.constant 5.000000e+00 : f32
    %214 = vector.broadcast %cst_75 : f32 to vector<1x256xf32>
    %215 = arith.cmpf oge, %0, %214 : vector<1x256xf32>
    %cst_76 = arith.constant 1.000000e+01 : f32
    %216 = vector.broadcast %cst_76 : f32 to vector<1x256xf32>
    %217 = arith.cmpf ole, %0, %216 : vector<1x256xf32>
    %cst_77 = arith.constant 5.000000e+00 : f32
    %218 = vector.broadcast %cst_77 : f32 to vector<1x256xf32>
    %219 = arith.cmpf oge, %1, %218 : vector<1x256xf32>
    %cst_78 = arith.constant 1.000000e+01 : f32
    %220 = vector.broadcast %cst_78 : f32 to vector<1x256xf32>
    %221 = arith.cmpf ole, %1, %220 : vector<1x256xf32>
    %c85_i32 = arith.constant 85 : i32
    %222 = tpu.dynamic_rotate %213 by %c85_i32 dim 1 : vector<8x256xf32>, i32 -> vector<8x256xf32>
    %223 = arith.andi %215, %219 : vector<1x256xi1>
    %cst_79 = arith.constant 0.000000e+00 : f32
    %224 = vector.shape_cast %223 : vector<1x256xi1> to vector<1x256xi1>
    %225 = vector.broadcast %224 : vector<1x256xi1> to vector<8x256xi1>
    %226 = vector.broadcast %cst_79 : f32 to vector<8x256xf32>
    %227 = arith.select %225, %222, %226 : vector<8x256xi1>, vector<8x256xf32>
    %c80_i32 = arith.constant 80 : i32
    %228 = tpu.dynamic_rotate %213 by %c80_i32 dim 1 : vector<8x256xf32>, i32 -> vector<8x256xf32>
    %cst_80 = arith.constant 0.000000e+00 : f32
    %229 = vector.shape_cast %215 : vector<1x256xi1> to vector<1x256xi1>
    %230 = vector.broadcast %229 : vector<1x256xi1> to vector<8x256xi1>
    %231 = vector.broadcast %cst_80 : f32 to vector<8x256xf32>
    %232 = arith.select %230, %228, %231 : vector<8x256xi1>, vector<8x256xf32>
    %c75_i32 = arith.constant 75 : i32
    %233 = tpu.dynamic_rotate %213 by %c75_i32 dim 1 : vector<8x256xf32>, i32 -> vector<8x256xf32>
    %234 = arith.andi %215, %221 : vector<1x256xi1>
    %cst_81 = arith.constant 0.000000e+00 : f32
    %235 = vector.shape_cast %234 : vector<1x256xi1> to vector<1x256xi1>
    %236 = vector.broadcast %235 : vector<1x256xi1> to vector<8x256xi1>
    %237 = vector.broadcast %cst_81 : f32 to vector<8x256xf32>
    %238 = arith.select %236, %233, %237 : vector<8x256xi1>, vector<8x256xf32>
    %c5_i32 = arith.constant 5 : i32
    %239 = tpu.dynamic_rotate %213 by %c5_i32 dim 1 : vector<8x256xf32>, i32 -> vector<8x256xf32>
    %cst_82 = arith.constant 0.000000e+00 : f32
    %240 = vector.shape_cast %219 : vector<1x256xi1> to vector<1x256xi1>
    %241 = vector.broadcast %240 : vector<1x256xi1> to vector<8x256xi1>
    %242 = vector.broadcast %cst_82 : f32 to vector<8x256xf32>
    %243 = arith.select %241, %239, %242 : vector<8x256xi1>, vector<8x256xf32>
    %c251_i32 = arith.constant 251 : i32
    %244 = tpu.dynamic_rotate %213 by %c251_i32 dim 1 : vector<8x256xf32>, i32 -> vector<8x256xf32>
    %cst_83 = arith.constant 0.000000e+00 : f32
    %245 = vector.shape_cast %221 : vector<1x256xi1> to vector<1x256xi1>
    %246 = vector.broadcast %245 : vector<1x256xi1> to vector<8x256xi1>
    %247 = vector.broadcast %cst_83 : f32 to vector<8x256xf32>
    %248 = arith.select %246, %244, %247 : vector<8x256xi1>, vector<8x256xf32>
    %c181_i32 = arith.constant 181 : i32
    %249 = tpu.dynamic_rotate %213 by %c181_i32 dim 1 : vector<8x256xf32>, i32 -> vector<8x256xf32>
    %250 = arith.andi %217, %219 : vector<1x256xi1>
    %cst_84 = arith.constant 0.000000e+00 : f32
    %251 = vector.shape_cast %250 : vector<1x256xi1> to vector<1x256xi1>
    %252 = vector.broadcast %251 : vector<1x256xi1> to vector<8x256xi1>
    %253 = vector.broadcast %cst_84 : f32 to vector<8x256xf32>
    %254 = arith.select %252, %249, %253 : vector<8x256xi1>, vector<8x256xf32>
    %c176_i32 = arith.constant 176 : i32
    %255 = tpu.dynamic_rotate %213 by %c176_i32 dim 1 : vector<8x256xf32>, i32 -> vector<8x256xf32>
    %cst_85 = arith.constant 0.000000e+00 : f32
    %256 = vector.shape_cast %217 : vector<1x256xi1> to vector<1x256xi1>
    %257 = vector.broadcast %256 : vector<1x256xi1> to vector<8x256xi1>
    %258 = vector.broadcast %cst_85 : f32 to vector<8x256xf32>
    %259 = arith.select %257, %255, %258 : vector<8x256xi1>, vector<8x256xf32>
    %c171_i32 = arith.constant 171 : i32
    %260 = tpu.dynamic_rotate %213 by %c171_i32 dim 1 : vector<8x256xf32>, i32 -> vector<8x256xf32>
    %261 = arith.andi %217, %221 : vector<1x256xi1>
    %cst_86 = arith.constant 0.000000e+00 : f32
    %262 = vector.shape_cast %261 : vector<1x256xi1> to vector<1x256xi1>
    %263 = vector.broadcast %262 : vector<1x256xi1> to vector<8x256xi1>
    %264 = vector.broadcast %cst_86 : f32 to vector<8x256xf32>
    %265 = arith.select %263, %260, %264 : vector<8x256xi1>, vector<8x256xf32>
    %266 = tpu.concatenate %227, %232, %238, %243, %213, %248, %254, %259, %265 in 0 : vector<8x256xf32>, vector<8x256xf32>, vector<8x256xf32>, vector<8x256xf32>, vector<8x256xf32>, vector<8x256xf32>, vector<8x256xf32>, vector<8x256xf32>, vector<8x256xf32> -> vector<72x256xf32>
    %c3 = arith.constant 3 : index
    %c0_87 = arith.constant 0 : index
    %c0_88 = arith.constant 0 : index
    %267 = vector.load %arg3[%c3, %c0_87, %c0_88] : memref<4x8x72xf32, #tpu.memory_space<vmem>>, vector<1x8x72xf32>
    %268 = vector.shape_cast %267 : vector<1x8x72xf32> to vector<8x72xf32>
    %cst_89 = arith.constant dense<0.000000e+00> : vector<8x256xf32>
    %269 = tpu.matmul %268, %266, %cst_89 {dimension_numbers = #tpu.dot_dimension_numbers<[1], [0], [0], [1], [0, 0, 1, 1], [], []>} : vector<8x72xf32>, vector<72x256xf32>, vector<8x256xf32> -> vector<8x256xf32>
    %c24_90 = arith.constant 24 : index
    %c0_91 = arith.constant 0 : index
    %270 = vector.load %arg4[%c24_90, %c0_91] : memref<32x1xf32, #tpu.memory_space<vmem>>, vector<8x1xf32>
    %271 = vector.broadcast %270 : vector<8x1xf32> to vector<8x256xf32>
    %272 = arith.addf %269, %271 : vector<8x256xf32>
    %273 = arith.negf %272 : vector<8x256xf32>
    %274 = math.exp %273 : vector<8x256xf32>
    %cst_92 = arith.constant 1.000000e+00 : f32
    %275 = vector.broadcast %cst_92 : f32 to vector<8x256xf32>
    %276 = arith.addf %275, %274 : vector<8x256xf32>
    %277 = arith.divf %275, %276 : vector<8x256xf32>
    %278 = arith.mulf %213, %277 : vector<8x256xf32>
    %c0_93 = arith.constant 0 : index
    %c24_94 = arith.constant 24 : index
    %c0_95 = arith.constant 0 : index
    %279 = vector.load %arg5[%c0_93, %c24_94, %c0_95] : memref<1x32x256xf32, #tpu.memory_space<vmem>>, vector<1x8x256xf32>
    %280 = vector.shape_cast %279 : vector<1x8x256xf32> to vector<8x256xf32>
    %281 = vector.shape_cast %278 : vector<8x256xf32> to vector<1x8x256xf32>
    tpu.vector_store %arg5[%c0_93, %c24_94, %c0_95], %281 {strides = array<i32>} : memref<1x32x256xf32, #tpu.memory_space<vmem>>, vector<1x8x256xf32>,
    return
  }
  func.func @transform_0(%arg0: i32) -> (i32, i32) {
    %c0_i32 = arith.constant 0 : i32
    %c0_i32_0 = arith.constant 0 : i32
    %c0_i32_1 = arith.constant 0 : i32
    return %c0_i32, %c0_i32_0 : i32, i32
  }
  func.func @transform_1(%arg0: i32) -> (i32, i32, i32) {
    %c0_i32 = arith.constant 0 : i32
    %c0_i32_0 = arith.constant 0 : i32
    %c0_i32_1 = arith.constant 0 : i32
    return %arg0, %c0_i32, %c0_i32_0 : i32, i32, i32
  }
  func.func @transform_2(%arg0: i32) -> (i32, i32, i32) {
    %c0_i32 = arith.constant 0 : i32
    %c0_i32_0 = arith.constant 0 : i32
    %c0_i32_1 = arith.constant 0 : i32
    %c0_i32_2 = arith.constant 0 : i32
    return %c0_i32, %c0_i32_0, %c0_i32_1 : i32, i32, i32
  }
  func.func @transform_3(%arg0: i32) -> (i32, i32) {
    %c0_i32 = arith.constant 0 : i32
    %c0_i32_0 = arith.constant 0 : i32
    %c0_i32_1 = arith.constant 0 : i32
    return %c0_i32, %c0_i32_0 : i32, i32
  }
  func.func @transform_4(%arg0: i32) -> (i32, i32, i32) {
    %c0_i32 = arith.constant 0 : i32
    %c0_i32_0 = arith.constant 0 : i32
    %c0_i32_1 = arith.constant 0 : i32
    return %arg0, %c0_i32, %c0_i32_0 : i32, i32, i32
  }
}

</mosaic_0001>

<llo_original>
// kernel: tpu_custom_call.1
$region0: #{tpu_custom_call.1}
  #allocation0 [shape = 'u32[]', space=smem, size = 0x4, offset = 0x4, fixed_abs, tag = 'smem constant byte address 0x4 - core index']
  #allocation1 [shape = 'u32[144,128]{1,0:T(1,128)}', space=vmem, size = 0x12000, scoped, tag = 'internal scratch']
  %s0 = inlined_call_operand.vmem [shape: f32[2,256], index: 0, kind: input, shape index: {}]
  %s1 = inlined_call_operand.hbm [shape: f32[2,32,256], index: 1, kind: input, shape index: {}]
  %s2 = inlined_call_operand.vmem [shape: f32[4,8,72], index: 2, kind: input, shape index: {}]
  %s3 = inlined_call_operand.vmem [shape: f32[32,1], index: 3, kind: input, shape index: {}]
  %s4 = inlined_call_operand.hbm [shape: f32[2,32,256], index: 4, kind: output, shape index: {}]
  %s5 = sld [smem:[#allocation0]]
  $region53: #{tpu_custom_call.1} parent=0
    _
  %s7 = ssub.s32 1, %s5
  %s8 = scalar_select 0, %s7, %s5
  $region1: #{tpu_custom_call.1} parent=0
    #allocation2 [shape = 'u8[65536]{0}', space=vmem, size = 0x10000, scoped, tag = 'input window, operand 1']
    #allocation3 [shape = 's32[2]{0}', space=sflag, size = 0x8, scoped, tag = 'scoped memory for tpu_custom_call.1']
    #allocation4 [shape = 's32[2]{0}', space=sflag, size = 0x8, scoped, tag = 'scoped memory for tpu_custom_call.1']
    #allocation5 [shape = 'u8[65536]{0}', space=vmem, size = 0x10000, scoped, tag = 'output window, operand 0']
    %9 = vsyncpa [#allocation3], 0
    %s10 = scalar_lea.sflag [#allocation3], 1
    %11 = vsyncpa %s10, 0
    %12 = vsyncpa [#allocation4], 0
    %s13 = scalar_lea.sflag [#allocation4], 1
    %14 = vsyncpa %s13, 0
    loop: start=0, step=1, limit=4
    $region2: #{tpu_custom_call.1} parent=1 // loop_pre_header
      _
    $region3: #{tpu_custom_call.1} parent=1 // loop_header
      %s16 = sphi 0, %s20
      %p17 = scmp.ge.s32.totalorder %s16, 4
      %s24 = sphi 0, %s24
      %s26 = sphi 0, %s24
      %s27 = sphi 0, %s26
      %s41 = sphi 0, %s27
      %s47 = sphi 0, %s49
      %s50 = sphi 0, %s47
      %s51 = sphi 0, %s50
      %s67 = sphi 0, %s51
      %s71 = sphi 0, %s71
      %s73 = sphi 0, %s71
      %s74 = sphi 0, %s73
      %s88 = sphi 0, %s74
      %s92 = sphi 0, %s92
      %s94 = sphi 0, %s92
      %s95 = sphi 0, %s94
      %s109 = sphi 0, %s95
      %s115 = sphi 0, %s117
      %s118 = sphi 0, %s115
      %s119 = sphi 0, %s118
      %s135 = sphi 0, %s119
    $region4: #{tpu_custom_call.1} parent=1 // loop_header_branch
      %19 = sbr.rel (%p17) target = $region8
    $region5: #{tpu_custom_call.1} parent=1 // loop_body
      %s21 = ssub.s32 %s16, 1
      %s22 = ssub.s32 %s16, 2
      %s23 = sadd.s32 %s16, 1
      %s25 = sadd.s32 %s24, 1
      %p28 = scmp.eq.s32.totalorder %s16, 1
      %p29 = scmp.ne.s32.totalorder %s24, %s26
      %p30 = scmp.eq.s32.totalorder %s16, 0
      %p31 = por %p29, %p30
      %p32 = scmp.ne.s32.totalorder %s24, %s26
      %p33 = scmp.eq.s32.totalorder %s21, 1
      %p34 = por %p32, %p33
      %p35 = scmp.ne.s32.totalorder %s26, %s27
      %p36 = scmp.eq.s32.totalorder %s21, 0
      %p37 = por %p35, %p36
      %p38 = scmp.ne.s32.totalorder %s26, %s27
      %p39 = scmp.eq.s32.totalorder %s22, 1
      %p40 = por %p38, %p39
      %p42 = scmp.ne.s32.totalorder %s27, %s41
      %p43 = scmp.eq.s32.totalorder %s22, 0
      %p44 = por %p42, %p43
      %s45 = ssub.s32 %s16, %s23
      %p46 = scmp.eq.s32.totalorder %s45, 0
      %s48 = sadd.s32 %s47, 1
      %s49 = scalar_select %p46, %s47, %s48
      %p52 = pneg %p46
      %p53 = scmp.eq.s32.totalorder %s16, 1
      %p54 = por %p52, %p53
      %p55 = scmp.ne.s32.totalorder %s47, %s50
      %p56 = scmp.eq.s32.totalorder %s16, 0
      %p57 = por %p55, %p56
      %p58 = scmp.ne.s32.totalorder %s47, %s50
      %p59 = scmp.eq.s32.totalorder %s21, 1
      %p60 = por %p58, %p59
      %p61 = scmp.ne.s32.totalorder %s50, %s51
      %p62 = scmp.eq.s32.totalorder %s21, 0
      %p63 = por %p61, %p62
      %p64 = scmp.ne.s32.totalorder %s50, %s51
      %p65 = scmp.eq.s32.totalorder %s22, 1
      %p66 = por %p64, %p65
      %p68 = scmp.ne.s32.totalorder %s51, %s67
      %p69 = scmp.eq.s32.totalorder %s22, 0
      %p70 = por %p68, %p69
      %s72 = sadd.s32 %s71, 1
      %p75 = scmp.eq.s32.totalorder %s16, 1
      %p76 = scmp.ne.s32.totalorder %s71, %s73
      %p77 = scmp.eq.s32.totalorder %s16, 0
      %p78 = por %p76, %p77
      %p79 = scmp.ne.s32.totalorder %s71, %s73
      %p80 = scmp.eq.s32.totalorder %s21, 1
      %p81 = por %p79, %p80
      %p82 = scmp.ne.s32.totalorder %s73, %s74
      %p83 = scmp.eq.s32.totalorder %s21, 0
      %p84 = por %p82, %p83
      %p85 = scmp.ne.s32.totalorder %s73, %s74
      %p86 = scmp.eq.s32.totalorder %s22, 1
      %p87 = por %p85, %p86
      %p89 = scmp.ne.s32.totalorder %s74, %s88
      %p90 = scmp.eq.s32.totalorder %s22, 0
      %p91 = por %p89, %p90
      %s93 = sadd.s32 %s92, 1
      %p96 = scmp.eq.s32.totalorder %s16, 1
      %p97 = scmp.ne.s32.totalorder %s92, %s94
      %p98 = scmp.eq.s32.totalorder %s16, 0
      %p99 = por %p97, %p98
      %p100 = scmp.ne.s32.totalorder %s92, %s94
      %p101 = scmp.eq.s32.totalorder %s21, 1
      %p102 = por %p100, %p101
      %p103 = scmp.ne.s32.totalorder %s94, %s95
      %p104 = scmp.eq.s32.totalorder %s21, 0
      %p105 = por %p103, %p104
      %p106 = scmp.ne.s32.totalorder %s94, %s95
      %p107 = scmp.eq.s32.totalorder %s22, 1
      %p108 = por %p106, %p107
      %p110 = scmp.ne.s32.totalorder %s95, %s109
      %p111 = scmp.eq.s32.totalorder %s22, 0
      %p112 = por %p110, %p111
      %s113 = ssub.s32 %s16, %s23
      %p114 = scmp.eq.s32.totalorder %s113, 0
      %s116 = sadd.s32 %s115, 1
      %s117 = scalar_select %p114, %s115, %s116
      %p120 = pneg %p114
      %p121 = scmp.eq.s32.totalorder %s16, 1
      %p122 = por %p120, %p121
      %p123 = scmp.ne.s32.totalorder %s115, %s118
      %p124 = scmp.eq.s32.totalorder %s16, 0
      %p125 = por %p123, %p124
      %p126 = scmp.ne.s32.totalorder %s115, %s118
      %p127 = scmp.eq.s32.totalorder %s21, 1
      %p128 = por %p126, %p127
      %p129 = scmp.ne.s32.totalorder %s118, %s119
      %p130 = scmp.eq.s32.totalorder %s21, 0
      %p131 = por %p129, %p130
      %p132 = scmp.ne.s32.totalorder %s118, %s119
      %p133 = scmp.eq.s32.totalorder %s22, 1
      %p134 = por %p132, %p133
      %p136 = scmp.ne.s32.totalorder %s119, %s135
      %p137 = scmp.eq.s32.totalorder %s22, 0
      %p138 = por %p136, %p137
      %p139 = scmp.le.s32.totalorder 1, %s16
      %p140 = scmp.lt.s32.totalorder %s16, 3
      %p141 = pnand %p139, %p140
      %p142 = pneg %p141
      // Predicated region
      $region9: #{tpu_custom_call.1} parent=5 // pred_check
        _
      $region10: #{tpu_custom_call.1} parent=5 // pred_check_branch
        %144 = sbr.rel (%p141) target = $region12
      $region11: #{tpu_custom_call.1} parent=5 // pred_region
        %s145 = ssub.s32 %s16, 1
        // Predicated region
        $region13: #{tpu_custom_call.1} parent=11 // pred_check
          %p146 = pneg %p37
        $region14: #{tpu_custom_call.1} parent=11 // pred_check_branch
          %148 = sbr.rel (%p146) target = $region16
        $region15: #{tpu_custom_call.1} parent=11 // pred_region
          _
        $region16: #{tpu_custom_call.1} parent=11 // pred_fallthru
          _
        // Predicated region
        $region17: #{tpu_custom_call.1} parent=11 // pred_check
          %p149 = pneg %p84
        $region18: #{tpu_custom_call.1} parent=11 // pred_check_branch
          %151 = sbr.rel (%p149) target = $region20
        $region19: #{tpu_custom_call.1} parent=11 // pred_region
          _
        $region20: #{tpu_custom_call.1} parent=11 // pred_fallthru
          _
        // Predicated region
        $region21: #{tpu_custom_call.1} parent=11 // pred_check
          %p152 = pneg %p105
        $region22: #{tpu_custom_call.1} parent=11 // pred_check_branch
          %154 = sbr.rel (%p152) target = $region24
        $region23: #{tpu_custom_call.1} parent=11 // pred_region
          _
        $region24: #{tpu_custom_call.1} parent=11 // pred_fallthru
          _
      $region12: #{tpu_custom_call.1} parent=5 // pred_fallthru
        _
      %p155 = scmp.lt.s32.totalorder %s16, 2
      // Predicated region
      $region25: #{tpu_custom_call.1} parent=5 // pred_check
        %p156 = pneg %p155
      $region26: #{tpu_custom_call.1} parent=5 // pred_check_branch
        %158 = sbr.rel (%p156) target = $region28
      $region27: #{tpu_custom_call.1} parent=5 // pred_region
        // Predicated region
        $region29: #{tpu_custom_call.1} parent=27 // pred_check
          %p159 = pneg %p57
        $region30: #{tpu_custom_call.1} parent=27 // pred_check_branch
          %161 = sbr.rel (%p159) target = $region32
        $region31: #{tpu_custom_call.1} parent=27 // pred_region
          %s162 = sand.u32 %s47, 1
          %s163 = scalar_lea.sflag [#allocation3], %s162
          %s164 = sand.u32 %s47, 1
          %s165 = smul.addr %s164, 64
          %s166 = scalar_lea.vmem [#allocation2], %s165
          %s168 = ssub.s32 1024, 1024
          %169 = vsyncadd %s163, %s168
          %s170 = smul.addr %s16, 8
          %s171 = smul.addr %s170, 128
          %s172 = scalar_lea.hbm %s1, %s171
          %s173 = sshll.u32 %s166, 4
          %s174 = int_to_ptr.vmem [resolvable:$true] %s173
          %179 = dma.hbm_to_vmem [thread:$0]  %s172, 1024, %s174, %s163, 256, 256, 16
        $region32: #{tpu_custom_call.1} parent=27 // pred_fallthru
          _
      $region28: #{tpu_custom_call.1} parent=5 // pred_fallthru
        _
      %p180 = scmp.le.s32.totalorder 1, %s16
      %p181 = scmp.lt.s32.totalorder %s16, 3
      %p182 = pnand %p180, %p181
      %p183 = pneg %p182
      // Predicated region
      $region33: #{tpu_custom_call.1} parent=5 // pred_check
        _
      $region34: #{tpu_custom_call.1} parent=5 // pred_check_branch
        %185 = sbr.rel (%p182) target = $region36
      $region35: #{tpu_custom_call.1} parent=5 // pred_region
        %s186 = ssub.s32 %s16, 1
        %s187 = sand.u32 %s50, 1
        %s188 = scalar_lea.sflag [#allocation3], %s187
        %s189 = sand.u32 %s50, 1
        %s190 = smul.addr %s189, 64
        %s191 = scalar_lea.vmem [#allocation2], %s190
        // Predicated region
        $region37: #{tpu_custom_call.1} parent=35 // pred_check
          %p192 = pneg %p63
        $region38: #{tpu_custom_call.1} parent=35 // pred_check_branch
          %194 = sbr.rel (%p192) target = $region40
        $region39: #{tpu_custom_call.1} parent=35 // pred_region
          %195 = dma.done %s188, 1024
        $region40: #{tpu_custom_call.1} parent=35 // pred_fallthru
          _
        %p196 = pneg %p37
        %p197 = pneg %p34
        %s198 = sand.u32 %s50, 1
        %s199 = scalar_lea.sflag [#allocation3], %s198
        %s200 = sand.u32 %s50, 1
        %s201 = smul.addr %s200, 64
        %s202 = scalar_lea.vmem [#allocation2], %s201
        %p203 = pneg %p63
        %p204 = pneg %p60
        %p205 = pneg %p84
        %p206 = pneg %p81
        %p207 = pneg %p105
        %p208 = pneg %p102
        %p209 = pneg %p131
        %p210 = pneg %p128
        %s211 = sand.u32 %s118, 1
        %s212 = scalar_lea.sflag [#allocation4], %s211
        %s213 = sand.u32 %s118, 1
        %s214 = smul.addr %s213, 64
        %s215 = scalar_lea.vmem [#allocation5], %s214
        %v216 = vld [vmem:[%s0] ss:$2 sm:$0x3]
        %s217 = scalar_lea.vmem %s0, 1
        %v218 = vld [vmem:[%s217] ss:$2 sm:$0x3]
        %v219 = vld [vmem:[%s191] sm:$0xff]
        %v220 = vld [vmem:[%s191 + $0x8] sm:$0xff]
        %vm221 = vcmp.ge.f32.partialorder %v216, 1.0
        %vm222 = vcmp.le.f32.partialorder %v216, 14.0
        %vm223 = vcmp.ge.f32.partialorder %v218, 1.0
        %vm224 = vcmp.le.f32.partialorder %v218, 14.0
        %225 = vrot.lane.b32.xlu0 %v219, 17
        %v226 = vpop.permute.xlu0 %225
        %227 = vrot.lane.b32.xlu0 %v220, 17
        %v228 = vpop.permute.xlu0 %227
        %v229 = vlaneseq
        %v230 = vand.u32 %v229, 127
        %vm231 = vcmp.lt.s32.totalorder %v230, 17
        %v232 = vsel %vm231, %v226, %v228
        %v233 = vsel %vm231, %v228, %v226
        %vm234 = vmand %vm221, %vm223
        %v235 = vsel %vm234, 1, 0
        %v236 = vlaneseq
        %v237 = vshrl.u32 %v236, 7
        %v238 = vsub.s32 0, %v237
        %v239 = vrot.slane %v235, %v238
        %v240 = vlaneseq
        %v241 = vshrl.u32 %v240, 7
        %v242 = vsub.s32 1, %v241
        %v243 = vrot.slane %v235, %v242
        %vm244 = vcmp.eq.s32.totalorder %v239, 1
        %vm245 = vcmp.eq.s32.totalorder %v243, 1
        %v246 = vsel %vm244, %v233, 0.0
        %v247 = vsel %vm245, %v232, 0.0
        %248 = vrot.lane.b32.xlu0 %v219, 16
        %v249 = vpop.permute.xlu0 %248
        %250 = vrot.lane.b32.xlu0 %v220, 16
        %v251 = vpop.permute.xlu0 %250
        %vm252 = vcmp.lt.s32.totalorder %v230, 16
        %v253 = vsel %vm252, %v249, %v251
        %v254 = vsel %vm252, %v251, %v249
        %v255 = vsel %vm221, 1, 0
        %v256 = vlaneseq
        %v257 = vshrl.u32 %v256, 7
        %v258 = vsub.s32 0, %v257
        %v259 = vrot.slane %v255, %v258
        %v260 = vlaneseq
        %v261 = vshrl.u32 %v260, 7
        %v262 = vsub.s32 1, %v261
        %v263 = vrot.slane %v255, %v262
        %vm264 = vcmp.eq.s32.totalorder %v259, 1
        %vm265 = vcmp.eq.s32.totalorder %v263, 1
        %v266 = vsel %vm264, %v254, 0.0
        %v267 = vsel %vm265, %v253, 0.0
        %268 = vrot.lane.b32.xlu0 %v219, 15
        %v269 = vpop.permute.xlu0 %268
        %270 = vrot.lane.b32.xlu0 %v220, 15
        %v271 = vpop.permute.xlu0 %270
        %vm272 = vcmp.lt.s32.totalorder %v230, 15
        %v273 = vsel %vm272, %v269, %v271
        %v274 = vsel %vm272, %v271, %v269
        %vm275 = vmand %vm221, %vm224
        %v276 = vsel %vm275, 1, 0
        %v277 = vlaneseq
        %v278 = vshrl.u32 %v277, 7
        %v279 = vsub.s32 0, %v278
        %v280 = vrot.slane %v276, %v279
        %v281 = vlaneseq
        %v282 = vshrl.u32 %v281, 7
        %v283 = vsub.s32 1, %v282
        %v284 = vrot.slane %v276, %v283
        %vm285 = vcmp.eq.s32.totalorder %v280, 1
        %vm286 = vcmp.eq.s32.totalorder %v284, 1
        %v287 = vsel %vm285, %v274, 0.0
        %v288 = vsel %vm286, %v273, 0.0
        %289 = vrot.lane.b32.xlu0 %v219, 1
        %v290 = vpop.permute.xlu0 %289
        %291 = vrot.lane.b32.xlu0 %v220, 1
        %v292 = vpop.permute.xlu0 %291
        %vm293 = vcmp.lt.s32.totalorder %v230, 1
        %v294 = vsel %vm293, %v290, %v292
        %v295 = vsel %vm293, %v292, %v290
        %v296 = vsel %vm223, 1, 0
        %v297 = vlaneseq
        %v298 = vshrl.u32 %v297, 7
        %v299 = vsub.s32 0, %v298
        %v300 = vrot.slane %v296, %v299
        %v301 = vlaneseq
        %v302 = vshrl.u32 %v301, 7
        %v303 = vsub.s32 1, %v302
        %v304 = vrot.slane %v296, %v303
        %vm305 = vcmp.eq.s32.totalorder %v300, 1
        %vm306 = vcmp.eq.s32.totalorder %v304, 1
        %v307 = vsel %vm305, %v295, 0.0
        %v308 = vsel %vm306, %v294, 0.0
        %309 = vrot.lane.b32.xlu0 %v219, 127
        %v310 = vpop.permute.xlu0 %309
        %311 = vrot.lane.b32.xlu0 %v220, 127
        %v312 = vpop.permute.xlu0 %311
        %vm313 = vcmp.lt.s32.totalorder %v230, 127
        %v314 = vsel %vm313, %v310, %v312
        %v315 = vsel %vm313, %v312, %v310
        %v316 = vsel %vm224, 1, 0
        %v317 = vlaneseq
        %v318 = vshrl.u32 %v317, 7
        %v319 = vsub.s32 0, %v318
        %v320 = vrot.slane %v316, %v319
        %v321 = vlaneseq
        %v322 = vshrl.u32 %v321, 7
        %v323 = vsub.s32 1, %v322
        %v324 = vrot.slane %v316, %v323
        %vm325 = vcmp.eq.s32.totalorder %v320, 1
        %vm326 = vcmp.eq.s32.totalorder %v324, 1
        %v327 = vsel %vm325, %v314, 0.0
        %v328 = vsel %vm326, %v315, 0.0
        %329 = vrot.lane.b32.xlu0 %v219, 113
        %v330 = vpop.permute.xlu0 %329
        %331 = vrot.lane.b32.xlu0 %v220, 113
        %v332 = vpop.permute.xlu0 %331
        %vm333 = vcmp.lt.s32.totalorder %v230, 113
        %v334 = vsel %vm333, %v330, %v332
        %v335 = vsel %vm333, %v332, %v330
        %vm336 = vmand %vm222, %vm223
        %v337 = vsel %vm336, 1, 0
        %v338 = vlaneseq
        %v339 = vshrl.u32 %v338, 7
        %v340 = vsub.s32 0, %v339
        %v341 = vrot.slane %v337, %v340
        %v342 = vlaneseq
        %v343 = vshrl.u32 %v342, 7
        %v344 = vsub.s32 1, %v343
        %v345 = vrot.slane %v337, %v344
        %vm346 = vcmp.eq.s32.totalorder %v341, 1
        %vm347 = vcmp.eq.s32.totalorder %v345, 1
        %v348 = vsel %vm346, %v334, 0.0
        %v349 = vsel %vm347, %v335, 0.0
        %350 = vrot.lane.b32.xlu0 %v219, 112
        %v351 = vpop.permute.xlu0 %350
        %352 = vrot.lane.b32.xlu0 %v220, 112
        %v353 = vpop.permute.xlu0 %352
        %vm354 = vcmp.lt.s32.totalorder %v230, 112
        %v355 = vsel %vm354, %v351, %v353
        %v356 = vsel %vm354, %v353, %v351
        %v357 = vsel %vm222, 1, 0
        %v358 = vlaneseq
        %v359 = vshrl.u32 %v358, 7
        %v360 = vsub.s32 0, %v359
        %v361 = vrot.slane %v357, %v360
        %v362 = vlaneseq
        %v363 = vshrl.u32 %v362, 7
        %v364 = vsub.s32 1, %v363
        %v365 = vrot.slane %v357, %v364
        %vm366 = vcmp.eq.s32.totalorder %v361, 1
        %vm367 = vcmp.eq.s32.totalorder %v365, 1
        %v368 = vsel %vm366, %v355, 0.0
        %v369 = vsel %vm367, %v356, 0.0
        %370 = vrot.lane.b32.xlu0 %v219, 111
        %v371 = vpop.permute.xlu0 %370
        %372 = vrot.lane.b32.xlu0 %v220, 111
        %v373 = vpop.permute.xlu0 %372
        %vm374 = vcmp.lt.s32.totalorder %v230, 111
        %v375 = vsel %vm374, %v371, %v373
        %v376 = vsel %vm374, %v373, %v371
        %vm377 = vmand %vm222, %vm224
        %v378 = vsel %vm377, 1, 0
        %v379 = vlaneseq
        %v380 = vshrl.u32 %v379, 7
        %v381 = vsub.s32 0, %v380
        %v382 = vrot.slane %v378, %v381
        %v383 = vlaneseq
        %v384 = vshrl.u32 %v383, 7
        %v385 = vsub.s32 1, %v384
        %v386 = vrot.slane %v378, %v385
        %vm387 = vcmp.eq.s32.totalorder %v382, 1
        %vm388 = vcmp.eq.s32.totalorder %v386, 1
        %v389 = vsel %vm387, %v375, 0.0
        %v390 = vsel %vm388, %v376, 0.0
        %v391 = vld [vmem:[%s2] sm:$0xff]
        %v392 = vld [vmem:[%s3] sm:$0xff]
        %394 = vset.pattern.permute.xlu0 0
        %395 = vperm.xlu0 %394, %v392
        %v396 = vpop.permute.xlu0 %395
        %vm398 = vcmask 588800
        %v400 = vsel %vm398, %v391, 0
        %402 = vmatprep.subr.mxu0 %v247
        %403 = vmatpush1.msra.mxu0 %v246
        %404 = vmatprep.subr.mxu0 %v267
        %405 = vmatpush1.msra.mxu0 %v266
        %406 = vmatprep.subr.mxu0 %v288
        %407 = vmatpush1.msra.mxu0 %v287
        %408 = vmatprep.subr.mxu0 %v308
        %409 = vmatpush1.msra.mxu0 %v307
        %410 = vmatprep.subr.mxu0 %v220
        %411 = vmatpush1.msra.mxu0 %v219
        %412 = vmatprep.subr.mxu0 %v328
        %413 = vmatpush1.msra.mxu0 %v327
        %414 = vmatprep.subr.mxu0 %v349
        %415 = vmatpush1.msra.mxu0 %v348
        %416 = vmatprep.subr.mxu0 %v369
        %417 = vmatpush1.msra.mxu0 %v368
        %418 = vmatprep.subr.mxu0 %v390
        %419 = vmatpush1.msra.mxu0 %v389
        %420 = vmatprep.subr.mxu0 0.0
        %421 = vmatpush1.msra.mxu0 0.0
        %422 = vmatprep.subr.mxu0 0.0
        %423 = vmatpush1.msra.mxu0 0.0
        %424 = vmatprep.subr.mxu0 0.0
        %425 = vmatpush1.msra.mxu0 0.0
        %426 = vmatprep.subr.mxu0 0.0
        %427 = vmatpush1.msra.mxu0 0.0
        %428 = vmatprep.subr.mxu0 0.0
        %429 = vmatpush1.msra.mxu0 0.0
        %430 = vmatprep.subr.mxu0 0.0
        %431 = vmatpush1.msra.mxu0 0.0
        %432 = vmatprep.subr.mxu0 0.0
        %433 = vmatpush1.msra.mxu0 0.0
        %434 = vmatprep.subr.mxu0 0.0
        %435 = vmatpush1.msra.mxu0 0.0
        %436 = vmatprep.subr.mxu0 0.0
        %437 = vmatpush1.msra.mxu0 0.0
        %438 = vmatprep.subr.mxu0 0.0
        %439 = vmatpush1.msra.mxu0 0.0
        %440 = vmatprep.subr.mxu0 0.0
        %441 = vmatpush1.msra.mxu0 0.0
        %442 = vmatprep.subr.mxu0 0.0
        %443 = vmatpush1.msra.mxu0 0.0
        %444 = vmatprep.subr.mxu0 0.0
        %445 = vmatpush1.msra.mxu0 0.0
        %446 = vmatprep.subr.mxu0 0.0
        %447 = vmatpush1.msra.mxu0 0.0
        %448 = vmatprep.subr.mxu0 0.0
        %449 = vmatpush1.msra.mxu0 0.0
        %450 = vmatprep.subr.mxu0 0.0
        %451 = vmatpush1.msra.mxu0 0.0
        %452 = vmatprep.subr.mxu0 0.0
        %453 = vmatpush1.msra.mxu0 0.0
        %454 = vmatprep.subr.mxu0 0.0
        %455 = vmatpush1.msra.mxu0 0.0
        %456 = vmatprep.subr.mxu0 0.0
        %457 = vmatpush1.msra.mxu0 0.0
        %458 = vmatprep.subr.mxu0 0.0
        %459 = vmatpush1.msra.mxu0 0.0
        %460 = vmatprep.subr.mxu0 0.0
        %461 = vmatpush1.msra.mxu0 0.0
        %462 = vmatprep.subr.mxu0 0.0
        %463 = vmatpush1.msra.mxu0 0.0
        %464 = vmatprep.subr.mxu0 0.0
        %465 = vmatpush1.msra.mxu0 0.0
        %466 = vmatprep.mubr.f32.mxu0 0.0
        %467 = vmatmul.mubr.f32.gmra.mrb[0].mxu0 %v400
        %v468 = vpop.f32.mrb[0].mxu0
        %v469 = vadd.f32 %v396, %v468
        %v470 = vpop.f32.mrb[0].mxu0
        %v471 = vadd.f32 %v396, %v470
        %472 = vdwg.mxu0
        %v473 = vxor.u32 %v469, 2147483648
        %v474 = vxor.u32 %v471, 2147483648
        %v475 = vmul.f32 %v473, 1.442695
        %v476 = vpow.pop %v475
        %v477 = vmul.f32 %v474, 1.442695
        %v478 = vpow.pop %v477
        %v479 = vadd.f32 %v476, 1.0
        %v480 = vadd.f32 %v478, 1.0
        %v481 = vrcp.pop %v479
        %v482 = vmul.f32 1.0, %v481
        %v483 = vrcp.pop %v480
        %v484 = vmul.f32 1.0, %v483
        %v485 = vmul.f32 %v219, %v482
        %v486 = vmul.f32 %v220, %v484
        %487 = vst [vmem:[%s215] sm:$0xff] %v485
        %488 = vst [vmem:[%s215 + $0x8] sm:$0xff] %v486
        %v489 = vld [vmem:[%s191 + $0x10] sm:$0xff]
        %v490 = vld [vmem:[%s191 + $0x18] sm:$0xff]
        %vm491 = vcmp.ge.f32.partialorder %v216, 2.0
        %vm492 = vcmp.le.f32.partialorder %v216, 13.0
        %vm493 = vcmp.ge.f32.partialorder %v218, 2.0
        %vm494 = vcmp.le.f32.partialorder %v218, 13.0
        %495 = vrot.lane.b32.xlu0 %v489, 34
        %v496 = vpop.permute.xlu0 %495
        %497 = vrot.lane.b32.xlu0 %v490, 34
        %v498 = vpop.permute.xlu0 %497
        %vm499 = vcmp.lt.s32.totalorder %v230, 34
        %v500 = vsel %vm499, %v496, %v498
        %v501 = vsel %vm499, %v498, %v496
        %vm502 = vmand %vm491, %vm493
        %v503 = vsel %vm502, 1, 0
        %v504 = vlaneseq
        %v505 = vshrl.u32 %v504, 7
        %v506 = vsub.s32 0, %v505
        %v507 = vrot.slane %v503, %v506
        %v508 = vlaneseq
        %v509 = vshrl.u32 %v508, 7
        %v510 = vsub.s32 1, %v509
        %v511 = vrot.slane %v503, %v510
        %vm512 = vcmp.eq.s32.totalorder %v507, 1
        %vm513 = vcmp.eq.s32.totalorder %v511, 1
        %v514 = vsel %vm512, %v501, 0.0
        %v515 = vsel %vm513, %v500, 0.0
        %516 = vrot.lane.b32.xlu0 %v489, 32
        %v517 = vpop.permute.xlu0 %516
        %518 = vrot.lane.b32.xlu0 %v490, 32
        %v519 = vpop.permute.xlu0 %518
        %vm520 = vcmp.lt.s32.totalorder %v230, 32
        %v521 = vsel %vm520, %v517, %v519
        %v522 = vsel %vm520, %v519, %v517
        %v523 = vsel %vm491, 1, 0
        %v524 = vlaneseq
        %v525 = vshrl.u32 %v524, 7
        %v526 = vsub.s32 0, %v525
        %v527 = vrot.slane %v523, %v526
        %v528 = vlaneseq
        %v529 = vshrl.u32 %v528, 7
        %v530 = vsub.s32 1, %v529
        %v531 = vrot.slane %v523, %v530
        %vm532 = vcmp.eq.s32.totalorder %v527, 1
        %vm533 = vcmp.eq.s32.totalorder %v531, 1
        %v534 = vsel %vm532, %v522, 0.0
        %v535 = vsel %vm533, %v521, 0.0
        %536 = vrot.lane.b32.xlu0 %v489, 30
        %v537 = vpop.permute.xlu0 %536
        %538 = vrot.lane.b32.xlu0 %v490, 30
        %v539 = vpop.permute.xlu0 %538
        %vm540 = vcmp.lt.s32.totalorder %v230, 30
        %v541 = vsel %vm540, %v537, %v539
        %v542 = vsel %vm540, %v539, %v537
        %vm543 = vmand %vm491, %vm494
        %v544 = vsel %vm543, 1, 0
        %v545 = vlaneseq
        %v546 = vshrl.u32 %v545, 7
        %v547 = vsub.s32 0, %v546
        %v548 = vrot.slane %v544, %v547
        %v549 = vlaneseq
        %v550 = vshrl.u32 %v549, 7
        %v551 = vsub.s32 1, %v550
        %v552 = vrot.slane %v544, %v551
        %vm553 = vcmp.eq.s32.totalorder %v548, 1
        %vm554 = vcmp.eq.s32.totalorder %v552, 1
        %v555 = vsel %vm553, %v542, 0.0
        %v556 = vsel %vm554, %v541, 0.0
        %557 = vrot.lane.b32.xlu0 %v489, 2
        %v558 = vpop.permute.xlu0 %557
        %559 = vrot.lane.b32.xlu0 %v490, 2
        %v560 = vpop.permute.xlu0 %559
        %vm561 = vcmp.lt.s32.totalorder %v230, 2
        %v562 = vsel %vm561, %v558, %v560
        %v563 = vsel %vm561, %v560, %v558
        %v564 = vsel %vm493, 1, 0
        %v565 = vlaneseq
        %v566 = vshrl.u32 %v565, 7
        %v567 = vsub.s32 0, %v566
        %v568 = vrot.slane %v564, %v567
        %v569 = vlaneseq
        %v570 = vshrl.u32 %v569, 7
        %v571 = vsub.s32 1, %v570
        %v572 = vrot.slane %v564, %v571
        %vm573 = vcmp.eq.s32.totalorder %v568, 1
        %vm574 = vcmp.eq.s32.totalorder %v572, 1
        %v575 = vsel %vm573, %v563, 0.0
        %v576 = vsel %vm574, %v562, 0.0
        %577 = vrot.lane.b32.xlu0 %v489, 126
        %v578 = vpop.permute.xlu0 %577
        %579 = vrot.lane.b32.xlu0 %v490, 126
        %v580 = vpop.permute.xlu0 %579
        %vm581 = vcmp.lt.s32.totalorder %v230, 126
        %v582 = vsel %vm581, %v578, %v580
        %v583 = vsel %vm581, %v580, %v578
        %v584 = vsel %vm494, 1, 0
        %v585 = vlaneseq
        %v586 = vshrl.u32 %v585, 7
        %v587 = vsub.s32 0, %v586
        %v588 = vrot.slane %v584, %v587
        %v589 = vlaneseq
        %v590 = vshrl.u32 %v589, 7
        %v591 = vsub.s32 1, %v590
        %v592 = vrot.slane %v584, %v591
        %vm593 = vcmp.eq.s32.totalorder %v588, 1
        %vm594 = vcmp.eq.s32.totalorder %v592, 1
        %v595 = vsel %vm593, %v582, 0.0
        %v596 = vsel %vm594, %v583, 0.0
        %597 = vrot.lane.b32.xlu0 %v489, 98
        %v598 = vpop.permute.xlu0 %597
        %599 = vrot.lane.b32.xlu0 %v490, 98
        %v600 = vpop.permute.xlu0 %599
        %vm601 = vcmp.lt.s32.totalorder %v230, 98
        %v602 = vsel %vm601, %v598, %v600
        %v603 = vsel %vm601, %v600, %v598
        %vm604 = vmand %vm492, %vm493
        %v605 = vsel %vm604, 1, 0
        %v606 = vlaneseq
        %v607 = vshrl.u32 %v606, 7
        %v608 = vsub.s32 0, %v607
        %v609 = vrot.slane %v605, %v608
        %v610 = vlaneseq
        %v611 = vshrl.u32 %v610, 7
        %v612 = vsub.s32 1, %v611
        %v613 = vrot.slane %v605, %v612
        %vm614 = vcmp.eq.s32.totalorder %v609, 1
        %vm615 = vcmp.eq.s32.totalorder %v613, 1
        %v616 = vsel %vm614, %v602, 0.0
        %v617 = vsel %vm615, %v603, 0.0
        %618 = vrot.lane.b32.xlu0 %v489, 96
        %v619 = vpop.permute.xlu0 %618
        %620 = vrot.lane.b32.xlu0 %v490, 96
        %v621 = vpop.permute.xlu0 %620
        %vm622 = vcmp.lt.s32.totalorder %v230, 96
        %v623 = vsel %vm622, %v619, %v621
        %v624 = vsel %vm622, %v621, %v619
        %v625 = vsel %vm492, 1, 0
        %v626 = vlaneseq
        %v627 = vshrl.u32 %v626, 7
        %v628 = vsub.s32 0, %v627
        %v629 = vrot.slane %v625, %v628
        %v630 = vlaneseq
        %v631 = vshrl.u32 %v630, 7
        %v632 = vsub.s32 1, %v631
        %v633 = vrot.slane %v625, %v632
        %vm634 = vcmp.eq.s32.totalorder %v629, 1
        %vm635 = vcmp.eq.s32.totalorder %v633, 1
        %v636 = vsel %vm634, %v623, 0.0
        %v637 = vsel %vm635, %v624, 0.0
        %638 = vrot.lane.b32.xlu0 %v489, 94
        %v639 = vpop.permute.xlu0 %638
        %640 = vrot.lane.b32.xlu0 %v490, 94
        %v641 = vpop.permute.xlu0 %640
        %vm642 = vcmp.lt.s32.totalorder %v230, 94
        %v643 = vsel %vm642, %v639, %v641
        %v644 = vsel %vm642, %v641, %v639
        %vm645 = vmand %vm492, %vm494
        %v646 = vsel %vm645, 1, 0
        %v647 = vlaneseq
        %v648 = vshrl.u32 %v647, 7
        %v649 = vsub.s32 0, %v648
        %v650 = vrot.slane %v646, %v649
        %v651 = vlaneseq
        %v652 = vshrl.u32 %v651, 7
        %v653 = vsub.s32 1, %v652
        %v654 = vrot.slane %v646, %v653
        %vm655 = vcmp.eq.s32.totalorder %v650, 1
        %vm656 = vcmp.eq.s32.totalorder %v654, 1
        %v657 = vsel %vm655, %v643, 0.0
        %v658 = vsel %vm656, %v644, 0.0
        %s659 = scalar_lea.vmem %s2, 8
        %v660 = vld [vmem:[%s659] sm:$0xff]
        %v661 = vld [vmem:[%s3 + $0x8] sm:$0xff]
        %663 = vset.pattern.permute.xlu0 0
        %664 = vperm.xlu0 %663, %v661
        %v665 = vpop.permute.xlu0 %664
        %v668 = vsel %vm398, %v660, 0
        %670 = vmatprep.subr.mxu0 %v515
        %671 = vmatpush1.msra.mxu0 %v514
        %672 = vmatprep.subr.mxu0 %v535
        %673 = vmatpush1.msra.mxu0 %v534
        %674 = vmatprep.subr.mxu0 %v556
        %675 = vmatpush1.msra.mxu0 %v555
        %676 = vmatprep.subr.mxu0 %v576
        %677 = vmatpush1.msra.mxu0 %v575
        %678 = vmatprep.subr.mxu0 %v490
        %679 = vmatpush1.msra.mxu0 %v489
        %680 = vmatprep.subr.mxu0 %v596
        %681 = vmatpush1.msra.mxu0 %v595
        %682 = vmatprep.subr.mxu0 %v617
        %683 = vmatpush1.msra.mxu0 %v616
        %684 = vmatprep.subr.mxu0 %v637
        %685 = vmatpush1.msra.mxu0 %v636
        %686 = vmatprep.subr.mxu0 %v658
        %687 = vmatpush1.msra.mxu0 %v657
        %688 = vmatprep.subr.mxu0 0.0
        %689 = vmatpush1.msra.mxu0 0.0
        %690 = vmatprep.subr.mxu0 0.0
        %691 = vmatpush1.msra.mxu0 0.0
        %692 = vmatprep.subr.mxu0 0.0
        %693 = vmatpush1.msra.mxu0 0.0
        %694 = vmatprep.subr.mxu0 0.0
        %695 = vmatpush1.msra.mxu0 0.0
        %696 = vmatprep.subr.mxu0 0.0
        %697 = vmatpush1.msra.mxu0 0.0
        %698 = vmatprep.subr.mxu0 0.0
        %699 = vmatpush1.msra.mxu0 0.0
        %700 = vmatprep.subr.mxu0 0.0
        %701 = vmatpush1.msra.mxu0 0.0
        %702 = vmatprep.subr.mxu0 0.0
        %703 = vmatpush1.msra.mxu0 0.0
        %704 = vmatprep.subr.mxu0 0.0
        %705 = vmatpush1.msra.mxu0 0.0
        %706 = vmatprep.subr.mxu0 0.0
        %707 = vmatpush1.msra.mxu0 0.0
        %708 = vmatprep.subr.mxu0 0.0
        %709 = vmatpush1.msra.mxu0 0.0
        %710 = vmatprep.subr.mxu0 0.0
        %711 = vmatpush1.msra.mxu0 0.0
        %712 = vmatprep.subr.mxu0 0.0
        %713 = vmatpush1.msra.mxu0 0.0
        %714 = vmatprep.subr.mxu0 0.0
        %715 = vmatpush1.msra.mxu0 0.0
        %716 = vmatprep.subr.mxu0 0.0
        %717 = vmatpush1.msra.mxu0 0.0
        %718 = vmatprep.subr.mxu0 0.0
        %719 = vmatpush1.msra.mxu0 0.0
        %720 = vmatprep.subr.mxu0 0.0
        %721 = vmatpush1.msra.mxu0 0.0
        %722 = vmatprep.subr.mxu0 0.0
        %723 = vmatpush1.msra.mxu0 0.0
        %724 = vmatprep.subr.mxu0 0.0
        %725 = vmatpush1.msra.mxu0 0.0
        %726 = vmatprep.subr.mxu0 0.0
        %727 = vmatpush1.msra.mxu0 0.0
        %728 = vmatprep.subr.mxu0 0.0
        %729 = vmatpush1.msra.mxu0 0.0
        %730 = vmatprep.subr.mxu0 0.0
        %731 = vmatpush1.msra.mxu0 0.0
        %732 = vmatprep.subr.mxu0 0.0
        %733 = vmatpush1.msra.mxu0 0.0
        %734 = vmatprep.mubr.f32.mxu0 0.0
        %735 = vmatmul.mubr.f32.gmra.mrb[0].mxu0 %v668
        %v736 = vpop.f32.mrb[0].mxu0
        %v737 = vadd.f32 %v665, %v736
        %v738 = vpop.f32.mrb[0].mxu0
        %v739 = vadd.f32 %v665, %v738
        %740 = vdwg.mxu0
        %v741 = vxor.u32 %v737, 2147483648
        %v742 = vxor.u32 %v739, 2147483648
        %v743 = vmul.f32 %v741, 1.442695
        %v744 = vpow.pop %v743
        %v745 = vmul.f32 %v742, 1.442695
        %v746 = vpow.pop %v745
        %v747 = vadd.f32 %v744, 1.0
        %v748 = vadd.f32 %v746, 1.0
        %v749 = vrcp.pop %v747
        %v750 = vmul.f32 1.0, %v749
        %v751 = vrcp.pop %v748
        %v752 = vmul.f32 1.0, %v751
        %v753 = vmul.f32 %v489, %v750
        %v754 = vmul.f32 %v490, %v752
        %755 = vst [vmem:[%s215 + $0x10] sm:$0xff] %v753
        %756 = vst [vmem:[%s215 + $0x18] sm:$0xff] %v754
        %v757 = vld [vmem:[%s191 + $0x20] sm:$0xff]
        %v758 = vld [vmem:[%s191 + $0x28] sm:$0xff]
        %vm759 = vcmp.ge.f32.partialorder %v216, 3.0
        %vm760 = vcmp.le.f32.partialorder %v216, 12.0
        %vm761 = vcmp.ge.f32.partialorder %v218, 3.0
        %vm762 = vcmp.le.f32.partialorder %v218, 12.0
        %763 = vrot.lane.b32.xlu0 %v757, 51
        %v764 = vpop.permute.xlu0 %763
        %765 = vrot.lane.b32.xlu0 %v758, 51
        %v766 = vpop.permute.xlu0 %765
        %vm767 = vcmp.lt.s32.totalorder %v230, 51
        %v768 = vsel %vm767, %v764, %v766
        %v769 = vsel %vm767, %v766, %v764
        %vm770 = vmand %vm759, %vm761
        %v771 = vsel %vm770, 1, 0
        %v772 = vlaneseq
        %v773 = vshrl.u32 %v772, 7
        %v774 = vsub.s32 0, %v773
        %v775 = vrot.slane %v771, %v774
        %v776 = vlaneseq
        %v777 = vshrl.u32 %v776, 7
        %v778 = vsub.s32 1, %v777
        %v779 = vrot.slane %v771, %v778
        %vm780 = vcmp.eq.s32.totalorder %v775, 1
        %vm781 = vcmp.eq.s32.totalorder %v779, 1
        %v782 = vsel %vm780, %v769, 0.0
        %v783 = vsel %vm781, %v768, 0.0
        %784 = vrot.lane.b32.xlu0 %v757, 48
        %v785 = vpop.permute.xlu0 %784
        %786 = vrot.lane.b32.xlu0 %v758, 48
        %v787 = vpop.permute.xlu0 %786
        %vm788 = vcmp.lt.s32.totalorder %v230, 48
        %v789 = vsel %vm788, %v785, %v787
        %v790 = vsel %vm788, %v787, %v785
        %v791 = vsel %vm759, 1, 0
        %v792 = vlaneseq
        %v793 = vshrl.u32 %v792, 7
        %v794 = vsub.s32 0, %v793
        %v795 = vrot.slane %v791, %v794
        %v796 = vlaneseq
        %v797 = vshrl.u32 %v796, 7
        %v798 = vsub.s32 1, %v797
        %v799 = vrot.slane %v791, %v798
        %vm800 = vcmp.eq.s32.totalorder %v795, 1
        %vm801 = vcmp.eq.s32.totalorder %v799, 1
        %v802 = vsel %vm800, %v790, 0.0
        %v803 = vsel %vm801, %v789, 0.0
        %804 = vrot.lane.b32.xlu0 %v757, 45
        %v805 = vpop.permute.xlu0 %804
        %806 = vrot.lane.b32.xlu0 %v758, 45
        %v807 = vpop.permute.xlu0 %806
        %vm808 = vcmp.lt.s32.totalorder %v230, 45
        %v809 = vsel %vm808, %v805, %v807
        %v810 = vsel %vm808, %v807, %v805
        %vm811 = vmand %vm759, %vm762
        %v812 = vsel %vm811, 1, 0
        %v813 = vlaneseq
        %v814 = vshrl.u32 %v813, 7
        %v815 = vsub.s32 0, %v814
        %v816 = vrot.slane %v812, %v815
        %v817 = vlaneseq
        %v818 = vshrl.u32 %v817, 7
        %v819 = vsub.s32 1, %v818
        %v820 = vrot.slane %v812, %v819
        %vm821 = vcmp.eq.s32.totalorder %v816, 1
        %vm822 = vcmp.eq.s32.totalorder %v820, 1
        %v823 = vsel %vm821, %v810, 0.0
        %v824 = vsel %vm822, %v809, 0.0
        %825 = vrot.lane.b32.xlu0 %v757, 3
        %v826 = vpop.permute.xlu0 %825
        %827 = vrot.lane.b32.xlu0 %v758, 3
        %v828 = vpop.permute.xlu0 %827
        %vm829 = vcmp.lt.s32.totalorder %v230, 3
        %v830 = vsel %vm829, %v826, %v828
        %v831 = vsel %vm829, %v828, %v826
        %v832 = vsel %vm761, 1, 0
        %v833 = vlaneseq
        %v834 = vshrl.u32 %v833, 7
        %v835 = vsub.s32 0, %v834
        %v836 = vrot.slane %v832, %v835
        %v837 = vlaneseq
        %v838 = vshrl.u32 %v837, 7
        %v839 = vsub.s32 1, %v838
        %v840 = vrot.slane %v832, %v839
        %vm841 = vcmp.eq.s32.totalorder %v836, 1
        %vm842 = vcmp.eq.s32.totalorder %v840, 1
        %v843 = vsel %vm841, %v831, 0.0
        %v844 = vsel %vm842, %v830, 0.0
        %845 = vrot.lane.b32.xlu0 %v757, 125
        %v846 = vpop.permute.xlu0 %845
        %847 = vrot.lane.b32.xlu0 %v758, 125
        %v848 = vpop.permute.xlu0 %847
        %vm849 = vcmp.lt.s32.totalorder %v230, 125
        %v850 = vsel %vm849, %v846, %v848
        %v851 = vsel %vm849, %v848, %v846
        %v852 = vsel %vm762, 1, 0
        %v853 = vlaneseq
        %v854 = vshrl.u32 %v853, 7
        %v855 = vsub.s32 0, %v854
        %v856 = vrot.slane %v852, %v855
        %v857 = vlaneseq
        %v858 = vshrl.u32 %v857, 7
        %v859 = vsub.s32 1, %v858
        %v860 = vrot.slane %v852, %v859
        %vm861 = vcmp.eq.s32.totalorder %v856, 1
        %vm862 = vcmp.eq.s32.totalorder %v860, 1
        %v863 = vsel %vm861, %v850, 0.0
        %v864 = vsel %vm862, %v851, 0.0
        %865 = vrot.lane.b32.xlu0 %v757, 83
        %v866 = vpop.permute.xlu0 %865
        %867 = vrot.lane.b32.xlu0 %v758, 83
        %v868 = vpop.permute.xlu0 %867
        %vm869 = vcmp.lt.s32.totalorder %v230, 83
        %v870 = vsel %vm869, %v866, %v868
        %v871 = vsel %vm869, %v868, %v866
        %vm872 = vmand %vm760, %vm761
        %v873 = vsel %vm872, 1, 0
        %v874 = vlaneseq
        %v875 = vshrl.u32 %v874, 7
        %v876 = vsub.s32 0, %v875
        %v877 = vrot.slane %v873, %v876
        %v878 = vlaneseq
        %v879 = vshrl.u32 %v878, 7
        %v880 = vsub.s32 1, %v879
        %v881 = vrot.slane %v873, %v880
        %vm882 = vcmp.eq.s32.totalorder %v877, 1
        %vm883 = vcmp.eq.s32.totalorder %v881, 1
        %v884 = vsel %vm882, %v870, 0.0
        %v885 = vsel %vm883, %v871, 0.0
        %886 = vrot.lane.b32.xlu0 %v757, 80
        %v887 = vpop.permute.xlu0 %886
        %888 = vrot.lane.b32.xlu0 %v758, 80
        %v889 = vpop.permute.xlu0 %888
        %vm890 = vcmp.lt.s32.totalorder %v230, 80
        %v891 = vsel %vm890, %v887, %v889
        %v892 = vsel %vm890, %v889, %v887
        %v893 = vsel %vm760, 1, 0
        %v894 = vlaneseq
        %v895 = vshrl.u32 %v894, 7
        %v896 = vsub.s32 0, %v895
        %v897 = vrot.slane %v893, %v896
        %v898 = vlaneseq
        %v899 = vshrl.u32 %v898, 7
        %v900 = vsub.s32 1, %v899
        %v901 = vrot.slane %v893, %v900
        %vm902 = vcmp.eq.s32.totalorder %v897, 1
        %vm903 = vcmp.eq.s32.totalorder %v901, 1
        %v904 = vsel %vm902, %v891, 0.0
        %v905 = vsel %vm903, %v892, 0.0
        %906 = vrot.lane.b32.xlu0 %v757, 77
        %v907 = vpop.permute.xlu0 %906
        %908 = vrot.lane.b32.xlu0 %v758, 77
        %v909 = vpop.permute.xlu0 %908
        %vm910 = vcmp.lt.s32.totalorder %v230, 77
        %v911 = vsel %vm910, %v907, %v909
        %v912 = vsel %vm910, %v909, %v907
        %vm913 = vmand %vm760, %vm762
        %v914 = vsel %vm913, 1, 0
        %v915 = vlaneseq
        %v916 = vshrl.u32 %v915, 7
        %v917 = vsub.s32 0, %v916
        %v918 = vrot.slane %v914, %v917
        %v919 = vlaneseq
        %v920 = vshrl.u32 %v919, 7
        %v921 = vsub.s32 1, %v920
        %v922 = vrot.slane %v914, %v921
        %vm923 = vcmp.eq.s32.totalorder %v918, 1
        %vm924 = vcmp.eq.s32.totalorder %v922, 1
        %v925 = vsel %vm923, %v911, 0.0
        %v926 = vsel %vm924, %v912, 0.0
        %s927 = scalar_lea.vmem %s2, 16
        %v928 = vld [vmem:[%s927] sm:$0xff]
        %v929 = vld [vmem:[%s3 + $0x10] sm:$0xff]
        %931 = vset.pattern.permute.xlu0 0
        %932 = vperm.xlu0 %931, %v929
        %v933 = vpop.permute.xlu0 %932
        %v936 = vsel %vm398, %v928, 0
        %938 = vmatprep.subr.mxu0 %v783
        %939 = vmatpush1.msra.mxu0 %v782
        %940 = vmatprep.subr.mxu0 %v803
        %941 = vmatpush1.msra.mxu0 %v802
        %942 = vmatprep.subr.mxu0 %v824
        %943 = vmatpush1.msra.mxu0 %v823
        %944 = vmatprep.subr.mxu0 %v844
        %945 = vmatpush1.msra.mxu0 %v843
        %946 = vmatprep.subr.mxu0 %v758
        %947 = vmatpush1.msra.mxu0 %v757
        %948 = vmatprep.subr.mxu0 %v864
        %949 = vmatpush1.msra.mxu0 %v863
        %950 = vmatprep.subr.mxu0 %v885
        %951 = vmatpush1.msra.mxu0 %v884
        %952 = vmatprep.subr.mxu0 %v905
        %953 = vmatpush1.msra.mxu0 %v904
        %954 = vmatprep.subr.mxu0 %v926
        %955 = vmatpush1.msra.mxu0 %v925
        %956 = vmatprep.subr.mxu0 0.0
        %957 = vmatpush1.msra.mxu0 0.0
        %958 = vmatprep.subr.mxu0 0.0
        %959 = vmatpush1.msra.mxu0 0.0
        %960 = vmatprep.subr.mxu0 0.0
        %961 = vmatpush1.msra.mxu0 0.0
        %962 = vmatprep.subr.mxu0 0.0
        %963 = vmatpush1.msra.mxu0 0.0
        %964 = vmatprep.subr.mxu0 0.0
        %965 = vmatpush1.msra.mxu0 0.0
        %966 = vmatprep.subr.mxu0 0.0
        %967 = vmatpush1.msra.mxu0 0.0
        %968 = vmatprep.subr.mxu0 0.0
        %969 = vmatpush1.msra.mxu0 0.0
        %970 = vmatprep.subr.mxu0 0.0
        %971 = vmatpush1.msra.mxu0 0.0
        %972 = vmatprep.subr.mxu0 0.0
        %973 = vmatpush1.msra.mxu0 0.0
        %974 = vmatprep.subr.mxu0 0.0
        %975 = vmatpush1.msra.mxu0 0.0
        %976 = vmatprep.subr.mxu0 0.0
        %977 = vmatpush1.msra.mxu0 0.0
        %978 = vmatprep.subr.mxu0 0.0
        %979 = vmatpush1.msra.mxu0 0.0
        %980 = vmatprep.subr.mxu0 0.0
        %981 = vmatpush1.msra.mxu0 0.0
        %982 = vmatprep.subr.mxu0 0.0
        %983 = vmatpush1.msra.mxu0 0.0
        %984 = vmatprep.subr.mxu0 0.0
        %985 = vmatpush1.msra.mxu0 0.0
        %986 = vmatprep.subr.mxu0 0.0
        %987 = vmatpush1.msra.mxu0 0.0
        %988 = vmatprep.subr.mxu0 0.0
        %989 = vmatpush1.msra.mxu0 0.0
        %990 = vmatprep.subr.mxu0 0.0
        %991 = vmatpush1.msra.mxu0 0.0
        %992 = vmatprep.subr.mxu0 0.0
        %993 = vmatpush1.msra.mxu0 0.0
        %994 = vmatprep.subr.mxu0 0.0
        %995 = vmatpush1.msra.mxu0 0.0
        %996 = vmatprep.subr.mxu0 0.0
        %997 = vmatpush1.msra.mxu0 0.0
        %998 = vmatprep.subr.mxu0 0.0
        %999 = vmatpush1.msra.mxu0 0.0
        %1000 = vmatprep.subr.mxu0 0.0
        %1001 = vmatpush1.msra.mxu0 0.0
        %1002 = vmatprep.mubr.f32.mxu0 0.0
        %1003 = vmatmul.mubr.f32.gmra.mrb[0].mxu0 %v936
        %v1004 = vpop.f32.mrb[0].mxu0
        %v1005 = vadd.f32 %v933, %v1004
        %v1006 = vpop.f32.mrb[0].mxu0
        %v1007 = vadd.f32 %v933, %v1006
        %1008 = vdwg.mxu0
        %v1009 = vxor.u32 %v1005, 2147483648
        %v1010 = vxor.u32 %v1007, 2147483648
        %v1011 = vmul.f32 %v1009, 1.442695
        %v1012 = vpow.pop %v1011
        %v1013 = vmul.f32 %v1010, 1.442695
        %v1014 = vpow.pop %v1013
        %v1015 = vadd.f32 %v1012, 1.0
        %v1016 = vadd.f32 %v1014, 1.0
        %v1017 = vrcp.pop %v1015
        %v1018 = vmul.f32 1.0, %v1017
        %v1019 = vrcp.pop %v1016
        %v1020 = vmul.f32 1.0, %v1019
        %v1021 = vmul.f32 %v757, %v1018
        %v1022 = vmul.f32 %v758, %v1020
        %1023 = vst [vmem:[%s215 + $0x20] sm:$0xff] %v1021
        %1024 = vst [vmem:[%s215 + $0x28] sm:$0xff] %v1022
        %v1025 = vld [vmem:[%s191 + $0x30] sm:$0xff]
        %v1026 = vld [vmem:[%s191 + $0x38] sm:$0xff]
        %vm1027 = vcmp.ge.f32.partialorder %v216, 5.0
        %vm1028 = vcmp.le.f32.partialorder %v216, 10.0
        %vm1029 = vcmp.ge.f32.partialorder %v218, 5.0
        %vm1030 = vcmp.le.f32.partialorder %v218, 10.0
        %1031 = vrot.lane.b32.xlu0 %v1025, 85
        %v1032 = vpop.permute.xlu0 %1031
        %1033 = vrot.lane.b32.xlu0 %v1026, 85
        %v1034 = vpop.permute.xlu0 %1033
        %vm1035 = vcmp.lt.s32.totalorder %v230, 85
        %v1036 = vsel %vm1035, %v1032, %v1034
        %v1037 = vsel %vm1035, %v1034, %v1032
        %vm1038 = vmand %vm1027, %vm1029
        %v1039 = vsel %vm1038, 1, 0
        %v1040 = vlaneseq
        %v1041 = vshrl.u32 %v1040, 7
        %v1042 = vsub.s32 0, %v1041
        %v1043 = vrot.slane %v1039, %v1042
        %v1044 = vlaneseq
        %v1045 = vshrl.u32 %v1044, 7
        %v1046 = vsub.s32 1, %v1045
        %v1047 = vrot.slane %v1039, %v1046
        %vm1048 = vcmp.eq.s32.totalorder %v1043, 1
        %vm1049 = vcmp.eq.s32.totalorder %v1047, 1
        %v1050 = vsel %vm1048, %v1037, 0.0
        %v1051 = vsel %vm1049, %v1036, 0.0
        %1052 = vrot.lane.b32.xlu0 %v1025, 80
        %v1053 = vpop.permute.xlu0 %1052
        %1054 = vrot.lane.b32.xlu0 %v1026, 80
        %v1055 = vpop.permute.xlu0 %1054
        %v1056 = vsel %vm890, %v1053, %v1055
        %v1057 = vsel %vm890, %v1055, %v1053
        %v1058 = vsel %vm1027, 1, 0
        %v1059 = vlaneseq
        %v1060 = vshrl.u32 %v1059, 7
        %v1061 = vsub.s32 0, %v1060
        %v1062 = vrot.slane %v1058, %v1061
        %v1063 = vlaneseq
        %v1064 = vshrl.u32 %v1063, 7
        %v1065 = vsub.s32 1, %v1064
        %v1066 = vrot.slane %v1058, %v1065
        %vm1067 = vcmp.eq.s32.totalorder %v1062, 1
        %vm1068 = vcmp.eq.s32.totalorder %v1066, 1
        %v1069 = vsel %vm1067, %v1057, 0.0
        %v1070 = vsel %vm1068, %v1056, 0.0
        %1071 = vrot.lane.b32.xlu0 %v1025, 75
        %v1072 = vpop.permute.xlu0 %1071
        %1073 = vrot.lane.b32.xlu0 %v1026, 75
        %v1074 = vpop.permute.xlu0 %1073
        %vm1075 = vcmp.lt.s32.totalorder %v230, 75
        %v1076 = vsel %vm1075, %v1072, %v1074
        %v1077 = vsel %vm1075, %v1074, %v1072
        %vm1078 = vmand %vm1027, %vm1030
        %v1079 = vsel %vm1078, 1, 0
        %v1080 = vlaneseq
        %v1081 = vshrl.u32 %v1080, 7
        %v1082 = vsub.s32 0, %v1081
        %v1083 = vrot.slane %v1079, %v1082
        %v1084 = vlaneseq
        %v1085 = vshrl.u32 %v1084, 7
        %v1086 = vsub.s32 1, %v1085
        %v1087 = vrot.slane %v1079, %v1086
        %vm1088 = vcmp.eq.s32.totalorder %v1083, 1
        %vm1089 = vcmp.eq.s32.totalorder %v1087, 1
        %v1090 = vsel %vm1088, %v1077, 0.0
        %v1091 = vsel %vm1089, %v1076, 0.0
        %1092 = vrot.lane.b32.xlu0 %v1025, 5
        %v1093 = vpop.permute.xlu0 %1092
        %1094 = vrot.lane.b32.xlu0 %v1026, 5
        %v1095 = vpop.permute.xlu0 %1094
        %vm1096 = vcmp.lt.s32.totalorder %v230, 5
        %v1097 = vsel %vm1096, %v1093, %v1095
        %v1098 = vsel %vm1096, %v1095, %v1093
        %v1099 = vsel %vm1029, 1, 0
        %v1100 = vlaneseq
        %v1101 = vshrl.u32 %v1100, 7
        %v1102 = vsub.s32 0, %v1101
        %v1103 = vrot.slane %v1099, %v1102
        %v1104 = vlaneseq
        %v1105 = vshrl.u32 %v1104, 7
        %v1106 = vsub.s32 1, %v1105
        %v1107 = vrot.slane %v1099, %v1106
        %vm1108 = vcmp.eq.s32.totalorder %v1103, 1
        %vm1109 = vcmp.eq.s32.totalorder %v1107, 1
        %v1110 = vsel %vm1108, %v1098, 0.0
        %v1111 = vsel %vm1109, %v1097, 0.0
        %1112 = vrot.lane.b32.xlu0 %v1025, 123
        %v1113 = vpop.permute.xlu0 %1112
        %1114 = vrot.lane.b32.xlu0 %v1026, 123
        %v1115 = vpop.permute.xlu0 %1114
        %vm1116 = vcmp.lt.s32.totalorder %v230, 123
        %v1117 = vsel %vm1116, %v1113, %v1115
        %v1118 = vsel %vm1116, %v1115, %v1113
        %v1119 = vsel %vm1030, 1, 0
        %v1120 = vlaneseq
        %v1121 = vshrl.u32 %v1120, 7
        %v1122 = vsub.s32 0, %v1121
        %v1123 = vrot.slane %v1119, %v1122
        %v1124 = vlaneseq
        %v1125 = vshrl.u32 %v1124, 7
        %v1126 = vsub.s32 1, %v1125
        %v1127 = vrot.slane %v1119, %v1126
        %vm1128 = vcmp.eq.s32.totalorder %v1123, 1
        %vm1129 = vcmp.eq.s32.totalorder %v1127, 1
        %v1130 = vsel %vm1128, %v1117, 0.0
        %v1131 = vsel %vm1129, %v1118, 0.0
        %1132 = vrot.lane.b32.xlu0 %v1025, 53
        %v1133 = vpop.permute.xlu0 %1132
        %1134 = vrot.lane.b32.xlu0 %v1026, 53
        %v1135 = vpop.permute.xlu0 %1134
        %vm1136 = vcmp.lt.s32.totalorder %v230, 53
        %v1137 = vsel %vm1136, %v1133, %v1135
        %v1138 = vsel %vm1136, %v1135, %v1133
        %vm1139 = vmand %vm1028, %vm1029
        %v1140 = vsel %vm1139, 1, 0
        %v1141 = vlaneseq
        %v1142 = vshrl.u32 %v1141, 7
        %v1143 = vsub.s32 0, %v1142
        %v1144 = vrot.slane %v1140, %v1143
        %v1145 = vlaneseq
        %v1146 = vshrl.u32 %v1145, 7
        %v1147 = vsub.s32 1, %v1146
        %v1148 = vrot.slane %v1140, %v1147
        %vm1149 = vcmp.eq.s32.totalorder %v1144, 1
        %vm1150 = vcmp.eq.s32.totalorder %v1148, 1
        %v1151 = vsel %vm1149, %v1137, 0.0
        %v1152 = vsel %vm1150, %v1138, 0.0
        %1153 = vrot.lane.b32.xlu0 %v1025, 48
        %v1154 = vpop.permute.xlu0 %1153
        %1155 = vrot.lane.b32.xlu0 %v1026, 48
        %v1156 = vpop.permute.xlu0 %1155
        %v1157 = vsel %vm788, %v1154, %v1156
        %v1158 = vsel %vm788, %v1156, %v1154
        %v1159 = vsel %vm1028, 1, 0
        %v1160 = vlaneseq
        %v1161 = vshrl.u32 %v1160, 7
        %v1162 = vsub.s32 0, %v1161
        %v1163 = vrot.slane %v1159, %v1162
        %v1164 = vlaneseq
        %v1165 = vshrl.u32 %v1164, 7
        %v1166 = vsub.s32 1, %v1165
        %v1167 = vrot.slane %v1159, %v1166
        %vm1168 = vcmp.eq.s32.totalorder %v1163, 1
        %vm1169 = vcmp.eq.s32.totalorder %v1167, 1
        %v1170 = vsel %vm1168, %v1157, 0.0
        %v1171 = vsel %vm1169, %v1158, 0.0
        %1172 = vrot.lane.b32.xlu0 %v1025, 43
        %v1173 = vpop.permute.xlu0 %1172
        %1174 = vrot.lane.b32.xlu0 %v1026, 43
        %v1175 = vpop.permute.xlu0 %1174
        %vm1176 = vcmp.lt.s32.totalorder %v230, 43
        %v1177 = vsel %vm1176, %v1173, %v1175
        %v1178 = vsel %vm1176, %v1175, %v1173
        %vm1179 = vmand %vm1028, %vm1030
        %v1180 = vsel %vm1179, 1, 0
        %v1181 = vlaneseq
        %v1182 = vshrl.u32 %v1181, 7
        %v1183 = vsub.s32 0, %v1182
        %v1184 = vrot.slane %v1180, %v1183
        %v1185 = vlaneseq
        %v1186 = vshrl.u32 %v1185, 7
        %v1187 = vsub.s32 1, %v1186
        %v1188 = vrot.slane %v1180, %v1187
        %vm1189 = vcmp.eq.s32.totalorder %v1184, 1
        %vm1190 = vcmp.eq.s32.totalorder %v1188, 1
        %v1191 = vsel %vm1189, %v1177, 0.0
        %v1192 = vsel %vm1190, %v1178, 0.0
        %s1193 = scalar_lea.vmem %s2, 24
        %v1194 = vld [vmem:[%s1193] sm:$0xff]
        %v1195 = vld [vmem:[%s3 + $0x18] sm:$0xff]
        %1197 = vset.pattern.permute.xlu0 0
        %1198 = vperm.xlu0 %1197, %v1195
        %v1199 = vpop.permute.xlu0 %1198
        %v1202 = vsel %vm398, %v1194, 0
        %1204 = vmatprep.subr.mxu0 %v1051
        %1205 = vmatpush1.msra.mxu0 %v1050
        %1206 = vmatprep.subr.mxu0 %v1070
        %1207 = vmatpush1.msra.mxu0 %v1069
        %1208 = vmatprep.subr.mxu0 %v1091
        %1209 = vmatpush1.msra.mxu0 %v1090
        %1210 = vmatprep.subr.mxu0 %v1111
        %1211 = vmatpush1.msra.mxu0 %v1110
        %1212 = vmatprep.subr.mxu0 %v1026
        %1213 = vmatpush1.msra.mxu0 %v1025
        %1214 = vmatprep.subr.mxu0 %v1131
        %1215 = vmatpush1.msra.mxu0 %v1130
        %1216 = vmatprep.subr.mxu0 %v1152
        %1217 = vmatpush1.msra.mxu0 %v1151
        %1218 = vmatprep.subr.mxu0 %v1171
        %1219 = vmatpush1.msra.mxu0 %v1170
        %1220 = vmatprep.subr.mxu0 %v1192
        %1221 = vmatpush1.msra.mxu0 %v1191
        %1222 = vmatprep.subr.mxu0 0.0
        %1223 = vmatpush1.msra.mxu0 0.0
        %1224 = vmatprep.subr.mxu0 0.0
        %1225 = vmatpush1.msra.mxu0 0.0
        %1226 = vmatprep.subr.mxu0 0.0
        %1227 = vmatpush1.msra.mxu0 0.0
        %1228 = vmatprep.subr.mxu0 0.0
        %1229 = vmatpush1.msra.mxu0 0.0
        %1230 = vmatprep.subr.mxu0 0.0
        %1231 = vmatpush1.msra.mxu0 0.0
        %1232 = vmatprep.subr.mxu0 0.0
        %1233 = vmatpush1.msra.mxu0 0.0
        %1234 = vmatprep.subr.mxu0 0.0
        %1235 = vmatpush1.msra.mxu0 0.0
        %1236 = vmatprep.subr.mxu0 0.0
        %1237 = vmatpush1.msra.mxu0 0.0
        %1238 = vmatprep.subr.mxu0 0.0
        %1239 = vmatpush1.msra.mxu0 0.0
        %1240 = vmatprep.subr.mxu0 0.0
        %1241 = vmatpush1.msra.mxu0 0.0
        %1242 = vmatprep.subr.mxu0 0.0
        %1243 = vmatpush1.msra.mxu0 0.0
        %1244 = vmatprep.subr.mxu0 0.0
        %1245 = vmatpush1.msra.mxu0 0.0
        %1246 = vmatprep.subr.mxu0 0.0
        %1247 = vmatpush1.msra.mxu0 0.0
        %1248 = vmatprep.subr.mxu0 0.0
        %1249 = vmatpush1.msra.mxu0 0.0
        %1250 = vmatprep.subr.mxu0 0.0
        %1251 = vmatpush1.msra.mxu0 0.0
        %1252 = vmatprep.subr.mxu0 0.0
        %1253 = vmatpush1.msra.mxu0 0.0
        %1254 = vmatprep.subr.mxu0 0.0
        %1255 = vmatpush1.msra.mxu0 0.0
        %1256 = vmatprep.subr.mxu0 0.0
        %1257 = vmatpush1.msra.mxu0 0.0
        %1258 = vmatprep.subr.mxu0 0.0
        %1259 = vmatpush1.msra.mxu0 0.0
        %1260 = vmatprep.subr.mxu0 0.0
        %1261 = vmatpush1.msra.mxu0 0.0
        %1262 = vmatprep.subr.mxu0 0.0
        %1263 = vmatpush1.msra.mxu0 0.0
        %1264 = vmatprep.subr.mxu0 0.0
        %1265 = vmatpush1.msra.mxu0 0.0
        %1266 = vmatprep.subr.mxu0 0.0
        %1267 = vmatpush1.msra.mxu0 0.0
        %1268 = vmatprep.mubr.f32.mxu0 0.0
        %1269 = vmatmul.mubr.f32.gmra.mrb[0].mxu0 %v1202
        %v1270 = vpop.f32.mrb[0].mxu0
        %v1271 = vadd.f32 %v1199, %v1270
        %v1272 = vpop.f32.mrb[0].mxu0
        %v1273 = vadd.f32 %v1199, %v1272
        %1274 = vdwg.mxu0
        %v1275 = vxor.u32 %v1271, 2147483648
        %v1276 = vxor.u32 %v1273, 2147483648
        %v1277 = vmul.f32 %v1275, 1.442695
        %v1278 = vpow.pop %v1277
        %v1279 = vmul.f32 %v1276, 1.442695
        %v1280 = vpow.pop %v1279
        %v1281 = vadd.f32 %v1278, 1.0
        %v1282 = vadd.f32 %v1280, 1.0
        %v1283 = vrcp.pop %v1281
        %v1284 = vmul.f32 1.0, %v1283
        %v1285 = vrcp.pop %v1282
        %v1286 = vmul.f32 1.0, %v1285
        %v1287 = vmul.f32 %v1025, %v1284
        %v1288 = vmul.f32 %v1026, %v1286
        %1289 = vst [vmem:[%s215 + $0x30] sm:$0xff] %v1287
        %1290 = vst [vmem:[%s215 + $0x38] sm:$0xff] %v1288
        %s1291 = sand.u32 %s118, 1
        %s1292 = scalar_lea.sflag [#allocation4], %s1291
        %s1293 = sand.u32 %s118, 1
        %s1294 = smul.addr %s1293, 64
        %s1295 = scalar_lea.vmem [#allocation5], %s1294
        // Predicated region
        $region41: #{tpu_custom_call.1} parent=35 // pred_check
          %p1296 = pneg %p128
        $region42: #{tpu_custom_call.1} parent=35 // pred_check_branch
          %1298 = sbr.rel (%p1296) target = $region44
        $region43: #{tpu_custom_call.1} parent=35 // pred_region
          %s1300 = ssub.s32 1024, 1024
          %1301 = vsyncadd %s1292, %s1300
          %s1302 = smul.addr %s21, 8
          %s1303 = smul.addr %s1302, 128
          %s1304 = scalar_lea.hbm %s4, %s1303
          %s1305 = sshll.u32 %s1295, 4
          %s1306 = int_to_ptr.vmem [resolvable:$true] %s1305
          %1311 = dma.vmem_to_hbm [thread:$0]  %s1306, 1024, %s1304, %s1292, 256, 256, 16
        $region44: #{tpu_custom_call.1} parent=35 // pred_fallthru
          _
      $region36: #{tpu_custom_call.1} parent=5 // pred_fallthru
        _
      %p1312 = scmp.le.s32.totalorder 2, %s16
      // Predicated region
      $region45: #{tpu_custom_call.1} parent=5 // pred_check
        %p1313 = pneg %p1312
      $region46: #{tpu_custom_call.1} parent=5 // pred_check_branch
        %1315 = sbr.rel (%p1313) target = $region48
      $region47: #{tpu_custom_call.1} parent=5 // pred_region
        %s1316 = ssub.s32 %s16, 2
        // Predicated region
        $region49: #{tpu_custom_call.1} parent=47 // pred_check
          %p1317 = pneg %p134
        $region50: #{tpu_custom_call.1} parent=47 // pred_check_branch
          %1319 = sbr.rel (%p1317) target = $region52
        $region51: #{tpu_custom_call.1} parent=47 // pred_region
          %s1320 = sand.u32 %s119, 1
          %s1321 = scalar_lea.sflag [#allocation4], %s1320
          %s1322 = sand.u32 %s119, 1
          %s1323 = smul.addr %s1322, 64
          %s1324 = scalar_lea.vmem [#allocation5], %s1323
          %1325 = dma.done %s1321, 1024
        $region52: #{tpu_custom_call.1} parent=47 // pred_fallthru
          _
      $region48: #{tpu_custom_call.1} parent=5 // pred_fallthru
        _
    $region6: #{tpu_custom_call.1} parent=1 // loop_footer
      %s20 = sadd.s32 1, %s16
    $region7: #{tpu_custom_call.1} parent=1 // loop_footer_branch
      %15 = sbr.rel target = $region3
    $region8: #{tpu_custom_call.1} parent=1 // loop_exit
      _
    %1326 = vsyncpa [#allocation3], 1
    %s1327 = scalar_lea.sflag [#allocation3], 1
    %1328 = vsyncpa %s1327, 1
    %1329 = vsyncpa [#allocation4], 1
    %s1330 = scalar_lea.sflag [#allocation4], 1
    %1331 = vsyncpa %s1330, 1

</llo_original>
